<compile_context>
chip_gen: v7x
topology: tpu7x:2x2x1
jax: 0.10.0
libtpu: 0.0.40
codegen_flags: <defaults>
</compile_context>

<pallas_src>
import jax
import jax.numpy as jnp
import numpy as np
from jax.experimental import pallas as pl
from jax.experimental.pallas import tpu as pltpu


# ----------------------------------------------------------------------------
# Host-side helpers (constants built with numpy; param transforms with jnp so
# they trace cleanly under jit)
# ----------------------------------------------------------------------------
def _bilinear_matrix(in_size, out_size):
    """(out, in) interpolation matrix: PyTorch bilinear, align_corners=False."""
    if in_size == out_size:
        return np.eye(out_size, dtype=np.float32)
    scale = in_size / out_size
    dst = np.arange(out_size, dtype=np.float64)
    src = np.maximum((dst + 0.5) * scale - 0.5, 0.0)
    i0 = np.minimum(np.floor(src).astype(np.int64), in_size - 1)
    i1 = np.minimum(i0 + 1, in_size - 1)
    frac = src - i0
    m = np.zeros((out_size, in_size), dtype=np.float64)
    rows = np.arange(out_size)
    m[rows, i0] += 1.0 - frac
    m[rows, i1] += frac
    return m.astype(np.float32)


def _shift_matrices(N, H):
    """S[dy] (3, N*H, N*H): S[dy][r, r'] = 1 iff r' = r + dy - 1 within the
    same image (zero rows at image top/bottom -> vertical 'same' padding)."""
    NH = N * H
    r = np.arange(NH)
    mats = []
    for dy in range(3):
        rp = r + dy - 1
        valid = (rp >= 0) & (rp < NH) & (rp // H == r // H)
        m = np.zeros((NH, NH), np.float32)
        m[r[valid], rp[valid]] = 1.0
        mats.append(m)
    return np.stack(mats)                      # (3, NH, NH)


def _row_conv_weights(w_hwio, W):
    """HWIO (3,3,C,Cout) -> pad-free banded row matrices (3, W*C, W*Cout).

    With a row-flattened image img of shape (rows, W*C),
        out[y] = sum_dy shifted_row(img, y + dy - 1) @ result[dy]
    reproduces a 3x3 'same' convolution (horizontal zero-padding is baked into
    the band structure: taps falling outside [0, W) are dropped)."""
    kh, kw, C, Cout = w_hwio.shape
    xs = np.arange(W)[None, :, None]           # source column
    x = np.arange(W)[None, None, :]            # destination column
    dx = np.arange(kw)[:, None, None]
    T = jnp.asarray((xs == x + dx - 1).astype(np.float32))       # (3, W, W)
    wr = jnp.einsum("dsx,ydio->ysixo", T, w_hwio.astype(jnp.float32))
    return wr.reshape(kh, W * C, W * Cout)


def fold_bn(bias, gamma, beta, running_mean, running_var, eps=1e-5):
    """Inference-mode BatchNorm + conv bias folded to per-channel scale/shift."""
    inv_std = 1.0 / jnp.sqrt(running_var + eps)
    scale = gamma * inv_std
    shift = (bias - running_mean) * scale + beta
    return scale, shift


# ----------------------------------------------------------------------------
# Fused Pallas kernel: one grid step, all intermediates live in VMEM values.
# ----------------------------------------------------------------------------
def _decoder_block_kernel(x_ref, s_ref, lx_ref, sh_ref,
                          w1x_ref, w1s_ref, w2_ref, ss_ref, o_ref):
    bf16, f32 = jnp.bfloat16, jnp.float32
    x = x_ref[...]             # (N*h, w*Cin)    bf16
    skip = s_ref[...]          # (N*H, W*Cskip)  bf16
    ss = ss_ref[...]           # (4, W*Cout)     f32

    # ---- conv1 + BN1 + ReLU over the implicit concat of (upsampled x, skip)
    # x part: vertical upsample + vertical shift folded into lx[dy];
    #         horizontal upsample + horizontal taps folded into w1x[dy].
    acc = None
    for dy in range(3):
        xv = jnp.dot(lx_ref[dy], x, preferred_element_type=f32).astype(bf16)
        t = jnp.dot(xv, w1x_ref[dy], preferred_element_type=f32)
        acc = t if acc is None else acc + t
    # skip part: vertical shift via 0/1 matrix (exact in bf16), horizontal taps
    # live in the band weights.  dy == 1 is the identity shift -> skip matmul.
    for dy in range(3):
        src = skip if dy == 1 else jnp.dot(
            sh_ref[dy], skip, preferred_element_type=f32).astype(bf16)
        acc = acc + jnp.dot(src, w1s_ref[dy], preferred_element_type=f32)
    y1 = jnp.maximum(acc * ss[0:1, :] + ss[1:2, :], 0.0).astype(bf16)

    # ---- conv2 + BN2 + ReLU (y1 never leaves VMEM; K is exactly W*Cout=128)
    acc2 = None
    for dy in range(3):
        src = y1 if dy == 1 else jnp.dot(
            sh_ref[dy], y1, preferred_element_type=f32).astype(bf16)
        t = jnp.dot(src, w2_ref[dy], preferred_element_type=f32)
        acc2 = t if acc2 is None else acc2 + t

    # lane-dense f32 store: (N*H, W*Cout) = (32, 128)
    o_ref[...] = jnp.maximum(acc2 * ss[2:3, :] + ss[3:4, :], 0.0)


def decoder_block_forward(x_nchw, skip_nchw, params):
    """x: (N, Cin, h, w), skip: (N, Cskip, H, W) -> (N, Cout, H, W)."""
    N, Cin, h, w = x_nchw.shape
    _, Cskip, H, W = skip_nchw.shape
    Cout = params["w1"].shape[-1]
    bf16 = jnp.bfloat16

    # ---- layout plumbing: channels-last, row-flattened, batch folded into M
    x_flat = jnp.transpose(x_nchw, (0, 2, 3, 1)).reshape(N * h, w * Cin).astype(bf16)
    s_flat = jnp.transpose(skip_nchw, (0, 2, 3, 1)).reshape(N * H, W * Cskip).astype(bf16)

    # ---- vertical shift matrices and (shift @ vertical-upsample) for x ------
    S = _shift_matrices(N, H)                                   # (3, NH, NH)
    mh = _bilinear_matrix(h, H)                                 # (H, h)
    mh_blk = np.kron(np.eye(N, dtype=np.float32), mh)           # (NH, N*h)
    L = np.einsum("dab,bc->dac", S, mh_blk)                     # (3, NH, N*h)

    # ---- pad-free banded conv weights; horizontal upsample folded into w1x --
    mw = _bilinear_matrix(w, W)                                 # (W, w)
    mwb = jnp.asarray(np.kron(mw.T, np.eye(Cin, dtype=np.float32)))  # (w*Cin, W*Cin)
    w1 = params["w1"].astype(jnp.float32)                       # (3,3,Cin+Cskip,Cout)
    w1x = jnp.einsum("sk,dko->dso", mwb,
                     _row_conv_weights(w1[:, :, :Cin, :], W))   # (3, w*Cin,   W*Cout)
    w1s = _row_conv_weights(w1[:, :, Cin:, :], W)               # (3, W*Cskip, W*Cout)
    w2r = _row_conv_weights(params["w2"].astype(jnp.float32), W)  # (3, W*Cout, W*Cout)

    # ---- BatchNorm (inference) + conv bias folded to per-lane scale/shift ---
    s1, t1 = fold_bn(params["b1"], params["g1"], params["beta1"],
                     params["rm1"], params["rv1"])
    s2, t2 = fold_bn(params["b2"], params["g2"], params["beta2"],
                     params["rm2"], params["rv2"])
    ss = jnp.stack([jnp.tile(s1, W), jnp.tile(t1, W),
                    jnp.tile(s2, W), jnp.tile(t2, W)]).astype(jnp.float32)  # (4, W*Cout)

    out_flat = pl.pallas_call(
        _decoder_block_kernel,
        out_shape=jax.ShapeDtypeStruct((N * H, W * Cout), jnp.float32),
        grid=(1,),
        in_specs=[
            pl.BlockSpec((N * h, w * Cin), lambda i: (0, 0)),
            pl.BlockSpec((N * H, W * Cskip), lambda i: (0, 0)),
            pl.BlockSpec((3, N * H, N * h), lambda i: (0, 0, 0)),
            pl.BlockSpec((3, N * H, N * H), lambda i: (0, 0, 0)),
            pl.BlockSpec((3, w * Cin, W * Cout), lambda i: (0, 0, 0)),
            pl.BlockSpec((3, W * Cskip, W * Cout), lambda i: (0, 0, 0)),
            pl.BlockSpec((3, W * Cout, W * Cout), lambda i: (0, 0, 0)),
            pl.BlockSpec((4, W * Cout), lambda i: (0, 0)),
        ],
        out_specs=pl.BlockSpec((N * H, W * Cout), lambda i: (0, 0)),
        compiler_params=pltpu.CompilerParams(
            dimension_semantics=("arbitrary",)),
    )(x_flat, s_flat,
      jnp.asarray(L).astype(bf16), jnp.asarray(S).astype(bf16),
      w1x.astype(bf16), w1s.astype(bf16), w2r.astype(bf16), ss)

    out = out_flat.reshape(N, H, W, Cout)       # contiguous (free) reshape
    return jnp.transpose(out, (0, 3, 1, 2))     # NHWC -> NCHW


# ----------------------------------------------------------------------------
# Pure-JAX reference (standard conv path, bf16 inputs/weights, f32 accumulate)
# ----------------------------------------------------------------------------
def decoder_block_reference(x_nchw, skip_nchw, params):
    N, Cin, h, w = x_nchw.shape
    _, Cskip, H, W = skip_nchw.shape
    bf16, f32 = jnp.bfloat16, jnp.float32

    mh = jnp.asarray(_bilinear_matrix(h, H))
    mw = jnp.asarray(_bilinear_matrix(w, W))

    xb = jnp.transpose(x_nchw, (0, 2, 3, 1)).astype(bf16).astype(f32)   # (N,h,w,Cin)
    sb = jnp.transpose(skip_nchw, (0, 2, 3, 1)).astype(bf16)            # (N,H,W,Cskip)

    tmp = jnp.einsum("Hh,nhwc->nHwc", mh, xb).astype(bf16).astype(f32)
    x_up = jnp.einsum("Ww,nHwc->nHWc", mw, tmp).astype(bf16)

    cat = jnp.concatenate([x_up, sb], axis=-1)                          # bf16

    def conv_bn_relu(inp_bf16, w_hwio, scale, shift):
        y = jax.lax.conv_general_dilated(
            inp_bf16, w_hwio.astype(bf16),
            window_strides=(1, 1), padding="SAME",
            dimension_numbers=("NHWC", "HWIO", "NHWC"),
            preferred_element_type=f32)
        return jnp.maximum(y * scale.reshape(1, 1, 1, -1)
                           + shift.reshape(1, 1, 1, -1), 0.0)

    s1, t1 = fold_bn(params["b1"], params["g1"], params["beta1"],
                     params["rm1"], params["rv1"])
    s2, t2 = fold_bn(params["b2"], params["g2"], params["beta2"],
                     params["rm2"], params["rv2"])
    y1 = conv_bn_relu(cat, params["w1"], s1, t1)
    y2 = conv_bn_relu(y1.astype(bf16), params["w2"], s2, t2)
    return jnp.transpose(y2, (0, 3, 1, 2))


# ----------------------------------------------------------------------------
if __name__ == "__main__":
    # in_channels=4, skip_channels=4, out_channels=8
    # x: (2, 4, 8, 8) low-res feature, skip: (2, 4, 16, 16) encoder skip
    N, Cin, Cskip, Cout = 2, 4, 4, 8
    h_in, w_in, H, W = 8, 8, 16, 16

    key = jax.random.PRNGKey(0)
    keys = jax.random.split(key, 12)

    x = jax.random.normal(keys[0], (N, Cin, h_in, w_in), dtype=jnp.float32)
    skip = jax.random.normal(keys[1], (N, Cskip, H, W), dtype=jnp.float32)

    c1_in = Cin + Cskip
    params = {
        # conv weights in HWIO layout: (3, 3, Cin, Cout)
        "w1": 0.1 * jax.random.normal(keys[2], (3, 3, c1_in, Cout), jnp.float32),
        "b1": 0.1 * jax.random.normal(keys[3], (Cout,), jnp.float32),
        "g1": 1.0 + 0.1 * jax.random.normal(keys[4], (Cout,), jnp.float32),
        "beta1": 0.1 * jax.random.normal(keys[5], (Cout,), jnp.float32),
        "rm1": 0.1 * jax.random.normal(keys[6], (Cout,), jnp.float32),
        "rv1": 1.0 + 0.1 * jnp.abs(jax.random.normal(keys[7], (Cout,), jnp.float32)),
        "w2": 0.1 * jax.random.normal(keys[8], (3, 3, Cout, Cout), jnp.float32),
        "b2": 0.1 * jax.random.normal(keys[9], (Cout,), jnp.float32),
        "g2": 1.0 + 0.1 * jax.random.normal(keys[10], (Cout,), jnp.float32),
        "beta2": 0.1 * jax.random.normal(keys[11], (Cout,), jnp.float32),
        "rm2": jnp.zeros((Cout,), jnp.float32),
        "rv2": jnp.ones((Cout,), jnp.float32),
    }

    fwd = jax.jit(decoder_block_forward)
    out = jax.block_until_ready(fwd(x, skip, params))
    assert out.shape == (N, Cout, H, W), out.shape

    ref = jax.block_until_ready(decoder_block_reference(x, skip, params))
    # Tolerance covers bf16 cast-boundary effects and the single-vs-separate
    # rounding of the (upsample-folded) conv1 weights vs XLA's conv reference.
    np.testing.assert_allclose(np.asarray(out), np.asarray(ref),
                               rtol=2e-2, atol=3e-2)

    print("KERNEL_OK")
</pallas_src>

<mosaic_0001>
module attributes {stable_mosaic.version = 11 : i64} {
  func.func @_decoder_block_kernel(%arg0: i32, %arg1: memref<16x32xbf16, #tpu.memory_space<vmem>>, %arg2: memref<32x64xbf16, #tpu.memory_space<vmem>>, %arg3: memref<3x32x16xbf16, #tpu.memory_space<vmem>>, %arg4: memref<3x32x32xbf16, #tpu.memory_space<vmem>>, %arg5: memref<3x32x128xbf16, #tpu.memory_space<vmem>>, %arg6: memref<3x64x128xbf16, #tpu.memory_space<vmem>>, %arg7: memref<3x128x128xbf16, #tpu.memory_space<vmem>>, %arg8: memref<4x128xf32, #tpu.memory_space<vmem>>, %arg9: memref<32x128xf32, #tpu.memory_space<vmem>>) attributes {dimension_semantics = [#tpu.dimension_semantics<arbitrary>], iteration_bounds = array<i64: 1>, scalar_prefetch = 0 : i64, scratch_operands = 0 : i64, tpu.core_type = #tpu.core_type<tc>, window_params = [{pipeline_mode = #tpu.pipeline_mode<synchronous>, transform_indices = @transform_0, window_bounds = array<i64: 16, 32>}, {pipeline_mode = #tpu.pipeline_mode<synchronous>, transform_indices = @transform_1, window_bounds = array<i64: 32, 64>}, {pipeline_mode = #tpu.pipeline_mode<synchronous>, transform_indices = @transform_2, window_bounds = array<i64: 3, 32, 16>}, {pipeline_mode = #tpu.pipeline_mode<synchronous>, transform_indices = @transform_3, window_bounds = array<i64: 3, 32, 32>}, {pipeline_mode = #tpu.pipeline_mode<synchronous>, transform_indices = @transform_4, window_bounds = array<i64: 3, 32, 128>}, {pipeline_mode = #tpu.pipeline_mode<synchronous>, transform_indices = @transform_5, window_bounds = array<i64: 3, 64, 128>}, {pipeline_mode = #tpu.pipeline_mode<synchronous>, transform_indices = @transform_6, window_bounds = array<i64: 3, 128, 128>}, {pipeline_mode = #tpu.pipeline_mode<synchronous>, transform_indices = @transform_7, window_bounds = array<i64: 4, 128>}, {pipeline_mode = #tpu.pipeline_mode<synchronous>, transform_indices = @transform_8, window_bounds = array<i64: 32, 128>}]} {
    %c0 = arith.constant 0 : index
    %c0_0 = arith.constant 0 : index
    %0 = vector.load %arg1[%c0, %c0_0] : memref<16x32xbf16, #tpu.memory_space<vmem>>, vector<16x32xbf16>
    %c0_1 = arith.constant 0 : index
    %c0_2 = arith.constant 0 : index
    %1 = vector.load %arg2[%c0_1, %c0_2] : memref<32x64xbf16, #tpu.memory_space<vmem>>, vector<32x64xbf16>
    %c0_3 = arith.constant 0 : index
    %c0_4 = arith.constant 0 : index
    %2 = vector.load %arg8[%c0_3, %c0_4] : memref<4x128xf32, #tpu.memory_space<vmem>>, vector<4x128xf32>
    %c0_5 = arith.constant 0 : index
    %c0_6 = arith.constant 0 : index
    %c0_7 = arith.constant 0 : index
    %3 = vector.load %arg3[%c0_5, %c0_6, %c0_7] : memref<3x32x16xbf16, #tpu.memory_space<vmem>>, vector<1x32x16xbf16>
    %4 = vector.shape_cast %3 : vector<1x32x16xbf16> to vector<32x16xbf16>
    %cst = arith.constant dense<0.000000e+00> : vector<32x32xf32>
    %5 = tpu.matmul %4, %0, %cst {dimension_numbers = #tpu.dot_dimension_numbers<[1], [0], [0], [1], [0, 0, 1, 1], [], []>} : vector<32x16xbf16>, vector<16x32xbf16>, vector<32x32xf32> -> vector<32x32xf32>
    %6 = arith.truncf %5 : vector<32x32xf32> to vector<32x32xbf16>
    %c0_8 = arith.constant 0 : index
    %c0_9 = arith.constant 0 : index
    %c0_10 = arith.constant 0 : index
    %7 = vector.load %arg5[%c0_8, %c0_9, %c0_10] : memref<3x32x128xbf16, #tpu.memory_space<vmem>>, vector<1x32x128xbf16>
    %8 = vector.shape_cast %7 : vector<1x32x128xbf16> to vector<32x128xbf16>
    %cst_11 = arith.constant dense<0.000000e+00> : vector<32x128xf32>
    %9 = tpu.matmul %6, %8, %cst_11 {dimension_numbers = #tpu.dot_dimension_numbers<[1], [0], [0], [1], [0, 0, 1, 1], [], []>} : vector<32x32xbf16>, vector<32x128xbf16>, vector<32x128xf32> -> vector<32x128xf32>
    %c1 = arith.constant 1 : index
    %c0_12 = arith.constant 0 : index
    %c0_13 = arith.constant 0 : index
    %10 = vector.load %arg3[%c1, %c0_12, %c0_13] : memref<3x32x16xbf16, #tpu.memory_space<vmem>>, vector<1x32x16xbf16>
    %11 = vector.shape_cast %10 : vector<1x32x16xbf16> to vector<32x16xbf16>
    %cst_14 = arith.constant dense<0.000000e+00> : vector<32x32xf32>
    %12 = tpu.matmul %11, %0, %cst_14 {dimension_numbers = #tpu.dot_dimension_numbers<[1], [0], [0], [1], [0, 0, 1, 1], [], []>} : vector<32x16xbf16>, vector<16x32xbf16>, vector<32x32xf32> -> vector<32x32xf32>
    %13 = arith.truncf %12 : vector<32x32xf32> to vector<32x32xbf16>
    %c1_15 = arith.constant 1 : index
    %c0_16 = arith.constant 0 : index
    %c0_17 = arith.constant 0 : index
    %14 = vector.load %arg5[%c1_15, %c0_16, %c0_17] : memref<3x32x128xbf16, #tpu.memory_space<vmem>>, vector<1x32x128xbf16>
    %15 = vector.shape_cast %14 : vector<1x32x128xbf16> to vector<32x128xbf16>
    %cst_18 = arith.constant dense<0.000000e+00> : vector<32x128xf32>
    %16 = tpu.matmul %13, %15, %cst_18 {dimension_numbers = #tpu.dot_dimension_numbers<[1], [0], [0], [1], [0, 0, 1, 1], [], []>} : vector<32x32xbf16>, vector<32x128xbf16>, vector<32x128xf32> -> vector<32x128xf32>
    %17 = arith.addf %9, %16 : vector<32x128xf32>
    %c2 = arith.constant 2 : index
    %c0_19 = arith.constant 0 : index
    %c0_20 = arith.constant 0 : index
    %18 = vector.load %arg3[%c2, %c0_19, %c0_20] : memref<3x32x16xbf16, #tpu.memory_space<vmem>>, vector<1x32x16xbf16>
    %19 = vector.shape_cast %18 : vector<1x32x16xbf16> to vector<32x16xbf16>
    %cst_21 = arith.constant dense<0.000000e+00> : vector<32x32xf32>
    %20 = tpu.matmul %19, %0, %cst_21 {dimension_numbers = #tpu.dot_dimension_numbers<[1], [0], [0], [1], [0, 0, 1, 1], [], []>} : vector<32x16xbf16>, vector<16x32xbf16>, vector<32x32xf32> -> vector<32x32xf32>
    %21 = arith.truncf %20 : vector<32x32xf32> to vector<32x32xbf16>
    %c2_22 = arith.constant 2 : index
    %c0_23 = arith.constant 0 : index
    %c0_24 = arith.constant 0 : index
    %22 = vector.load %arg5[%c2_22, %c0_23, %c0_24] : memref<3x32x128xbf16, #tpu.memory_space<vmem>>, vector<1x32x128xbf16>
    %23 = vector.shape_cast %22 : vector<1x32x128xbf16> to vector<32x128xbf16>
    %cst_25 = arith.constant dense<0.000000e+00> : vector<32x128xf32>
    %24 = tpu.matmul %21, %23, %cst_25 {dimension_numbers = #tpu.dot_dimension_numbers<[1], [0], [0], [1], [0, 0, 1, 1], [], []>} : vector<32x32xbf16>, vector<32x128xbf16>, vector<32x128xf32> -> vector<32x128xf32>
    %25 = arith.addf %17, %24 : vector<32x128xf32>
    %c0_26 = arith.constant 0 : index
    %c0_27 = arith.constant 0 : index
    %c0_28 = arith.constant 0 : index
    %26 = vector.load %arg4[%c0_26, %c0_27, %c0_28] : memref<3x32x32xbf16, #tpu.memory_space<vmem>>, vector<1x32x32xbf16>
    %27 = vector.shape_cast %26 : vector<1x32x32xbf16> to vector<32x32xbf16>
    %cst_29 = arith.constant dense<0.000000e+00> : vector<32x64xf32>
    %28 = tpu.matmul %27, %1, %cst_29 {dimension_numbers = #tpu.dot_dimension_numbers<[1], [0], [0], [1], [0, 0, 1, 1], [], []>} : vector<32x32xbf16>, vector<32x64xbf16>, vector<32x64xf32> -> vector<32x64xf32>
    %29 = arith.truncf %28 : vector<32x64xf32> to vector<32x64xbf16>
    %c0_30 = arith.constant 0 : index
    %c0_31 = arith.constant 0 : index
    %c0_32 = arith.constant 0 : index
    %30 = vector.load %arg6[%c0_30, %c0_31, %c0_32] : memref<3x64x128xbf16, #tpu.memory_space<vmem>>, vector<1x64x128xbf16>
    %31 = vector.shape_cast %30 : vector<1x64x128xbf16> to vector<64x128xbf16>
    %cst_33 = arith.constant dense<0.000000e+00> : vector<32x128xf32>
    %32 = tpu.matmul %29, %31, %cst_33 {dimension_numbers = #tpu.dot_dimension_numbers<[1], [0], [0], [1], [0, 0, 1, 1], [], []>} : vector<32x64xbf16>, vector<64x128xbf16>, vector<32x128xf32> -> vector<32x128xf32>
    %33 = arith.addf %25, %32 : vector<32x128xf32>
    %c1_34 = arith.constant 1 : index
    %c0_35 = arith.constant 0 : index
    %c0_36 = arith.constant 0 : index
    %34 = vector.load %arg6[%c1_34, %c0_35, %c0_36] : memref<3x64x128xbf16, #tpu.memory_space<vmem>>, vector<1x64x128xbf16>
    %35 = vector.shape_cast %34 : vector<1x64x128xbf16> to vector<64x128xbf16>
    %cst_37 = arith.constant dense<0.000000e+00> : vector<32x128xf32>
    %36 = tpu.matmul %1, %35, %cst_37 {dimension_numbers = #tpu.dot_dimension_numbers<[1], [0], [0], [1], [0, 0, 1, 1], [], []>} : vector<32x64xbf16>, vector<64x128xbf16>, vector<32x128xf32> -> vector<32x128xf32>
    %37 = arith.addf %33, %36 : vector<32x128xf32>
    %c2_38 = arith.constant 2 : index
    %c0_39 = arith.constant 0 : index
    %c0_40 = arith.constant 0 : index
    %38 = vector.load %arg4[%c2_38, %c0_39, %c0_40] : memref<3x32x32xbf16, #tpu.memory_space<vmem>>, vector<1x32x32xbf16>
    %39 = vector.shape_cast %38 : vector<1x32x32xbf16> to vector<32x32xbf16>
    %cst_41 = arith.constant dense<0.000000e+00> : vector<32x64xf32>
    %40 = tpu.matmul %39, %1, %cst_41 {dimension_numbers = #tpu.dot_dimension_numbers<[1], [0], [0], [1], [0, 0, 1, 1], [], []>} : vector<32x32xbf16>, vector<32x64xbf16>, vector<32x64xf32> -> vector<32x64xf32>
    %41 = arith.truncf %40 : vector<32x64xf32> to vector<32x64xbf16>
    %c2_42 = arith.constant 2 : index
    %c0_43 = arith.constant 0 : index
    %c0_44 = arith.constant 0 : index
    %42 = vector.load %arg6[%c2_42, %c0_43, %c0_44] : memref<3x64x128xbf16, #tpu.memory_space<vmem>>, vector<1x64x128xbf16>
    %43 = vector.shape_cast %42 : vector<1x64x128xbf16> to vector<64x128xbf16>
    %cst_45 = arith.constant dense<0.000000e+00> : vector<32x128xf32>
    %44 = tpu.matmul %41, %43, %cst_45 {dimension_numbers = #tpu.dot_dimension_numbers<[1], [0], [0], [1], [0, 0, 1, 1], [], []>} : vector<32x64xbf16>, vector<64x128xbf16>, vector<32x128xf32> -> vector<32x128xf32>
    %45 = arith.addf %37, %44 : vector<32x128xf32>
    %46 = vector.extract_strided_slice %2 {offsets = [0, 0], sizes = [1, 128], strides = [1, 1]} : vector<4x128xf32> to vector<1x128xf32>
    %47 = vector.broadcast %46 : vector<1x128xf32> to vector<32x128xf32>
    %48 = arith.mulf %45, %47 : vector<32x128xf32>
    %49 = vector.extract_strided_slice %2 {offsets = [1, 0], sizes = [1, 128], strides = [1, 1]} : vector<4x128xf32> to vector<1x128xf32>
    %50 = vector.broadcast %49 : vector<1x128xf32> to vector<32x128xf32>
    %51 = arith.addf %48, %50 : vector<32x128xf32>
    %cst_46 = arith.constant 0.000000e+00 : f32
    %52 = vector.broadcast %cst_46 : f32 to vector<32x128xf32>
    %53 = arith.maximumf %51, %52 : vector<32x128xf32>
    %54 = arith.truncf %53 : vector<32x128xf32> to vector<32x128xbf16>
    %c0_47 = arith.constant 0 : index
    %c0_48 = arith.constant 0 : index
    %c0_49 = arith.constant 0 : index
    %55 = vector.load %arg4[%c0_47, %c0_48, %c0_49] : memref<3x32x32xbf16, #tpu.memory_space<vmem>>, vector<1x32x32xbf16>
    %56 = vector.shape_cast %55 : vector<1x32x32xbf16> to vector<32x32xbf16>
    %cst_50 = arith.constant dense<0.000000e+00> : vector<32x128xf32>
    %57 = tpu.matmul %56, %54, %cst_50 {dimension_numbers = #tpu.dot_dimension_numbers<[1], [0], [0], [1], [0, 0, 1, 1], [], []>} : vector<32x32xbf16>, vector<32x128xbf16>, vector<32x128xf32> -> vector<32x128xf32>
    %58 = arith.truncf %57 : vector<32x128xf32> to vector<32x128xbf16>
    %c0_51 = arith.constant 0 : index
    %c0_52 = arith.constant 0 : index
    %c0_53 = arith.constant 0 : index
    %59 = vector.load %arg7[%c0_51, %c0_52, %c0_53] : memref<3x128x128xbf16, #tpu.memory_space<vmem>>, vector<1x128x128xbf16>
    %60 = vector.shape_cast %59 : vector<1x128x128xbf16> to vector<128x128xbf16>
    %cst_54 = arith.constant dense<0.000000e+00> : vector<32x128xf32>
    %61 = tpu.matmul %58, %60, %cst_54 {dimension_numbers = #tpu.dot_dimension_numbers<[1], [0], [0], [1], [0, 0, 1, 1], [], []>} : vector<32x128xbf16>, vector<128x128xbf16>, vector<32x128xf32> -> vector<32x128xf32>
    %c1_55 = arith.constant 1 : index
    %c0_56 = arith.constant 0 : index
    %c0_57 = arith.constant 0 : index
    %62 = vector.load %arg7[%c1_55, %c0_56, %c0_57] : memref<3x128x128xbf16, #tpu.memory_space<vmem>>, vector<1x128x128xbf16>
    %63 = vector.shape_cast %62 : vector<1x128x128xbf16> to vector<128x128xbf16>
    %cst_58 = arith.constant dense<0.000000e+00> : vector<32x128xf32>
    %64 = tpu.matmul %54, %63, %cst_58 {dimension_numbers = #tpu.dot_dimension_numbers<[1], [0], [0], [1], [0, 0, 1, 1], [], []>} : vector<32x128xbf16>, vector<128x128xbf16>, vector<32x128xf32> -> vector<32x128xf32>
    %65 = arith.addf %61, %64 : vector<32x128xf32>
    %c2_59 = arith.constant 2 : index
    %c0_60 = arith.constant 0 : index
    %c0_61 = arith.constant 0 : index
    %66 = vector.load %arg4[%c2_59, %c0_60, %c0_61] : memref<3x32x32xbf16, #tpu.memory_space<vmem>>, vector<1x32x32xbf16>
    %67 = vector.shape_cast %66 : vector<1x32x32xbf16> to vector<32x32xbf16>
    %cst_62 = arith.constant dense<0.000000e+00> : vector<32x128xf32>
    %68 = tpu.matmul %67, %54, %cst_62 {dimension_numbers = #tpu.dot_dimension_numbers<[1], [0], [0], [1], [0, 0, 1, 1], [], []>} : vector<32x32xbf16>, vector<32x128xbf16>, vector<32x128xf32> -> vector<32x128xf32>
    %69 = arith.truncf %68 : vector<32x128xf32> to vector<32x128xbf16>
    %c2_63 = arith.constant 2 : index
    %c0_64 = arith.constant 0 : index
    %c0_65 = arith.constant 0 : index
    %70 = vector.load %arg7[%c2_63, %c0_64, %c0_65] : memref<3x128x128xbf16, #tpu.memory_space<vmem>>, vector<1x128x128xbf16>
    %71 = vector.shape_cast %70 : vector<1x128x128xbf16> to vector<128x128xbf16>
    %cst_66 = arith.constant dense<0.000000e+00> : vector<32x128xf32>
    %72 = tpu.matmul %69, %71, %cst_66 {dimension_numbers = #tpu.dot_dimension_numbers<[1], [0], [0], [1], [0, 0, 1, 1], [], []>} : vector<32x128xbf16>, vector<128x128xbf16>, vector<32x128xf32> -> vector<32x128xf32>
    %73 = arith.addf %65, %72 : vector<32x128xf32>
    %74 = vector.extract_strided_slice %2 {offsets = [2, 0], sizes = [1, 128], strides = [1, 1]} : vector<4x128xf32> to vector<1x128xf32>
    %75 = vector.broadcast %74 : vector<1x128xf32> to vector<32x128xf32>
    %76 = arith.mulf %73, %75 : vector<32x128xf32>
    %77 = vector.extract_strided_slice %2 {offsets = [3, 0], sizes = [1, 128], strides = [1, 1]} : vector<4x128xf32> to vector<1x128xf32>
    %78 = vector.broadcast %77 : vector<1x128xf32> to vector<32x128xf32>
    %79 = arith.addf %76, %78 : vector<32x128xf32>
    %cst_67 = arith.constant 0.000000e+00 : f32
    %80 = vector.broadcast %cst_67 : f32 to vector<32x128xf32>
    %81 = arith.maximumf %79, %80 : vector<32x128xf32>
    %c0_68 = arith.constant 0 : index
    %c0_69 = arith.constant 0 : index
    %82 = vector.load %arg9[%c0_68, %c0_69] : memref<32x128xf32, #tpu.memory_space<vmem>>, vector<32x128xf32>
    tpu.vector_store %arg9[%c0_68, %c0_69], %81 {strides = array<i32>} : memref<32x128xf32, #tpu.memory_space<vmem>>, vector<32x128xf32>,
    return
  }
  func.func @transform_0(%arg0: i32) -> (i32, i32) {
    %c0_i32 = arith.constant 0 : i32
    %c0_i32_0 = arith.constant 0 : i32
    %c0_i32_1 = arith.constant 0 : i32
    return %c0_i32, %c0_i32_0 : i32, i32
  }
  func.func @transform_1(%arg0: i32) -> (i32, i32) {
    %c0_i32 = arith.constant 0 : i32
    %c0_i32_0 = arith.constant 0 : i32
    %c0_i32_1 = arith.constant 0 : i32
    return %c0_i32, %c0_i32_0 : i32, i32
  }
  func.func @transform_2(%arg0: i32) -> (i32, i32, i32) {
    %c0_i32 = arith.constant 0 : i32
    %c0_i32_0 = arith.constant 0 : i32
    %c0_i32_1 = arith.constant 0 : i32
    %c0_i32_2 = arith.constant 0 : i32
    return %c0_i32, %c0_i32_0, %c0_i32_1 : i32, i32, i32
  }
  func.func @transform_3(%arg0: i32) -> (i32, i32, i32) {
    %c0_i32 = arith.constant 0 : i32
    %c0_i32_0 = arith.constant 0 : i32
    %c0_i32_1 = arith.constant 0 : i32
    %c0_i32_2 = arith.constant 0 : i32
    return %c0_i32, %c0_i32_0, %c0_i32_1 : i32, i32, i32
  }
  func.func @transform_4(%arg0: i32) -> (i32, i32, i32) {
    %c0_i32 = arith.constant 0 : i32
    %c0_i32_0 = arith.constant 0 : i32
    %c0_i32_1 = arith.constant 0 : i32
    %c0_i32_2 = arith.constant 0 : i32
    return %c0_i32, %c0_i32_0, %c0_i32_1 : i32, i32, i32
  }
  func.func @transform_5(%arg0: i32) -> (i32, i32, i32) {
    %c0_i32 = arith.constant 0 : i32
    %c0_i32_0 = arith.constant 0 : i32
    %c0_i32_1 = arith.constant 0 : i32
    %c0_i32_2 = arith.constant 0 : i32
    return %c0_i32, %c0_i32_0, %c0_i32_1 : i32, i32, i32
  }
  func.func @transform_6(%arg0: i32) -> (i32, i32, i32) {
    %c0_i32 = arith.constant 0 : i32
    %c0_i32_0 = arith.constant 0 : i32
    %c0_i32_1 = arith.constant 0 : i32
    %c0_i32_2 = arith.constant 0 : i32
    return %c0_i32, %c0_i32_0, %c0_i32_1 : i32, i32, i32
  }
  func.func @transform_7(%arg0: i32) -> (i32, i32) {
    %c0_i32 = arith.constant 0 : i32
    %c0_i32_0 = arith.constant 0 : i32
    %c0_i32_1 = arith.constant 0 : i32
    return %c0_i32, %c0_i32_0 : i32, i32
  }
  func.func @transform_8(%arg0: i32) -> (i32, i32) {
    %c0_i32 = arith.constant 0 : i32
    %c0_i32_0 = arith.constant 0 : i32
    %c0_i32_1 = arith.constant 0 : i32
    return %c0_i32, %c0_i32_0 : i32, i32
  }
}

</mosaic_0001>

<llo_original>
// kernel: tile.23
$region0: #{tile.23}
  #allocation0 [shape = 's32[1]{0}', space=sflag, size = 0x4, scoped, tag = 'scoped memory for tile.23']
  %s0 = inlined_call_operand.vmem [shape: f32[8], index: 0, kind: input, shape index: {}]
  %s1 = inlined_call_operand.vmem [shape: f32[16,8], index: 1, kind: output, shape index: {}]
  // Predicated region
  $region2: #{tile.23} parent=0 // pred_check
    _
  $region3: #{tile.23} parent=0 // pred_check_branch
    %3 = sbr.rel (0) target = $region5
  $region4: #{tile.23} parent=0 // pred_region
    _
  $region5: #{tile.23} parent=0 // pred_fallthru
    _
  %v4 = vld [vmem:[%s0] ss:$0 sm:$0xff]
  %5 = vst [vmem:[%s1] sm:$0xff] %v4
  %s6 = scalar_lea.vmem %s1, 8
  %7 = vst [vmem:[%s6] sm:$0xff] %v4

// kernel: tile.36
$region0: #{tile.36}
  %s0 = inlined_call_operand.vmem [shape: f32[16,8], index: 0, kind: input, shape index: {}]
  %s1 = inlined_call_operand.vmem [shape: f32[1,128], index: 1, kind: output, shape index: {}]
  $region1: #{tile.36} parent=0
    #allocation0 [shape = 'u8[4096]{0}', space=vmem, size = 0x1000, scoped, tag = 'scoped mem for output reshape']
    %v2 = vld [vmem:[%s0] sm:$0x1]
    %vm3 = vcmask 64512
    %4 = vst.msk [vmem:[#allocation0] sm:$0x1] %vm3, %v2
    %s5 = scalar_lea.vmem %s0, 15
    %v6 = vld [vmem:[%s5] sm:$0x1]
    %7 = vrot.lane.b32.xlu0 %v6, 120
    %v8 = vpop.permute.xlu0 %7
    %vm9 = vcmask 1048512
    %10 = vst.msk [vmem:[#allocation0] sm:$0x1] %vm9, %v8
    %s11 = scalar_lea.vmem %s0, 14
    %v12 = vld [vmem:[%s11] sm:$0x1]
    %13 = vrot.lane.b32.xlu0 %v12, 112
    %v14 = vpop.permute.xlu0 %13
    %vm15 = vcmask 982912
    %16 = vst.msk [vmem:[#allocation0] sm:$0x1] %vm15, %v14
    %s17 = scalar_lea.vmem %s0, 13
    %v18 = vld [vmem:[%s17] sm:$0x1]
    %19 = vrot.lane.b32.xlu0 %v18, 104
    %v20 = vpop.permute.xlu0 %19
    %vm21 = vcmask 917312
    %22 = vst.msk [vmem:[#allocation0] sm:$0x1] %vm21, %v20
    %s23 = scalar_lea.vmem %s0, 12
    %v24 = vld [vmem:[%s23] sm:$0x1]
    %25 = vrot.lane.b32.xlu0 %v24, 96
    %v26 = vpop.permute.xlu0 %25
    %vm27 = vcmask 851712
    %28 = vst.msk [vmem:[#allocation0] sm:$0x1] %vm27, %v26
    %s29 = scalar_lea.vmem %s0, 11
    %v30 = vld [vmem:[%s29] sm:$0x1]
    %31 = vrot.lane.b32.xlu0 %v30, 88
    %v32 = vpop.permute.xlu0 %31
    %vm33 = vcmask 786112
    %34 = vst.msk [vmem:[#allocation0] sm:$0x1] %vm33, %v32
    %s35 = scalar_lea.vmem %s0, 10
    %v36 = vld [vmem:[%s35] sm:$0x1]
    %37 = vrot.lane.b32.xlu0 %v36, 80
    %v38 = vpop.permute.xlu0 %37
    %vm39 = vcmask 720512
    %40 = vst.msk [vmem:[#allocation0] sm:$0x1] %vm39, %v38
    %s41 = scalar_lea.vmem %s0, 9
    %v42 = vld [vmem:[%s41] sm:$0x1]
    %43 = vrot.lane.b32.xlu0 %v42, 72
    %v44 = vpop.permute.xlu0 %43
    %vm45 = vcmask 654912
    %46 = vst.msk [vmem:[#allocation0] sm:$0x1] %vm45, %v44
    %s47 = scalar_lea.vmem %s0, 8
    %v48 = vld [vmem:[%s47] sm:$0x1]
    %49 = vrot.lane.b32.xlu0 %v48, 64
    %v50 = vpop.permute.xlu0 %49
    %vm51 = vcmask 589312
    %52 = vst.msk [vmem:[#allocation0] sm:$0x1] %vm51, %v50
    %s53 = scalar_lea.vmem %s0, 7
    %v54 = vld [vmem:[%s53] sm:$0x1]
    %55 = vrot.lane.b32.xlu0 %v54, 56
    %v56 = vpop.permute.xlu0 %55
    %vm57 = vcmask 523712
    %58 = vst.msk [vmem:[#allocation0] sm:$0x1] %vm57, %v56
    %s59 = scalar_lea.vmem %s0, 6
    %v60 = vld [vmem:[%s59] sm:$0x1]
    %61 = vrot.lane.b32.xlu0 %v60, 48
    %v62 = vpop.permute.xlu0 %61
    %vm63 = vcmask 458112
    %64 = vst.msk [vmem:[#allocation0] sm:$0x1] %vm63, %v62
    %s65 = scalar_lea.vmem %s0, 5
    %v66 = vld [vmem:[%s65] sm:$0x1]
    %67 = vrot.lane.b32.xlu0 %v66, 40
    %v68 = vpop.permute.xlu0 %67
    %vm69 = vcmask 392512
    %70 = vst.msk [vmem:[#allocation0] sm:$0x1] %vm69, %v68
    %s71 = scalar_lea.vmem %s0, 4
    %v72 = vld [vmem:[%s71] sm:$0x1]
    %73 = vrot.lane.b32.xlu0 %v72, 32
    %v74 = vpop.permute.xlu0 %73
    %vm75 = vcmask 326912
    %76 = vst.msk [vmem:[#allocation0] sm:$0x1] %vm75, %v74
    %s77 = scalar_lea.vmem %s0, 3
    %v78 = vld [vmem:[%s77] sm:$0x1]
    %79 = vrot.lane.b32.xlu0 %v78, 24
    %v80 = vpop.permute.xlu0 %79
    %vm81 = vcmask 261312
    %82 = vst.msk [vmem:[#allocation0] sm:$0x1] %vm81, %v80
    %s83 = scalar_lea.vmem %s0, 2
    %v84 = vld [vmem:[%s83] sm:$0x1]
    %85 = vrot.lane.b32.xlu0 %v84, 16
    %v86 = vpop.permute.xlu0 %85
    %vm87 = vcmask 195712
    %88 = vst.msk [vmem:[#allocation0] sm:$0x1] %vm87, %v86
    %s89 = scalar_lea.vmem %s0, 1
    %v90 = vld [vmem:[%s89] sm:$0x1]
    %91 = vrot.lane.b32.xlu0 %v90, 8
    %v92 = vpop.permute.xlu0 %91
    %vm93 = vcmask 130112
    %94 = vst.msk [vmem:[#allocation0] sm:$0x1] %vm93, %v92
    %s96 = sshllo.u32 0, 1
    %v98 = vld [vmem:[#allocation0] sm:%s96]
    %s99 = sshllo.u32 0, 1
    %100 = vst [vmem:[%s1] sm:%s99] %v98

// kernel: decoder_block_forward.1
$region0: #{decoder_block_forward.1}
  #allocation0 [shape = 'u32[]', space=smem, size = 0x4, offset = 0x4, fixed_abs, tag = 'smem constant byte address 0x4 - core index']
  #allocation1 [shape = 'u32[144,128]{1,0:T(1,128)}', space=vmem, size = 0x12000, scoped, tag = 'internal scratch']
  %s0 = inlined_call_operand.vmem [shape: bf16[16,32], index: 0, kind: input, shape index: {}]
  %s1 = inlined_call_operand.vmem [shape: bf16[32,64], index: 1, kind: input, shape index: {}]
  %s2 = inlined_call_operand.vmem [shape: bf16[3,32,16], index: 2, kind: input, shape index: {}]
  %s3 = inlined_call_operand.vmem [shape: bf16[3,32,32], index: 3, kind: input, shape index: {}]
  %s4 = inlined_call_operand.vmem [shape: bf16[3,32,128], index: 4, kind: input, shape index: {}]
  %s5 = inlined_call_operand.vmem [shape: bf16[3,64,128], index: 5, kind: input, shape index: {}]
  %s6 = inlined_call_operand.vmem [shape: bf16[3,128,128], index: 6, kind: input, shape index: {}]
  %s7 = inlined_call_operand.vmem [shape: f32[4,128], index: 7, kind: input, shape index: {}]
  %s8 = inlined_call_operand.vmem [shape: f32[32,128], index: 8, kind: output, shape index: {}]
  %s9 = sld [smem:[#allocation0]]
  $region42: #{decoder_block_forward.1} parent=0
    _
  %s11 = ssub.s32 1, %s9
  %s12 = scalar_select 0, %s11, %s9
  // Predicated region
  $region2: #{decoder_block_forward.1} parent=0 // pred_check
    _
  $region3: #{decoder_block_forward.1} parent=0 // pred_check_branch
    %14 = sbr.rel (0) target = $region5
  $region4: #{decoder_block_forward.1} parent=0 // pred_region
    _
  $region5: #{decoder_block_forward.1} parent=0 // pred_fallthru
    _
  // Predicated region
  $region6: #{decoder_block_forward.1} parent=0 // pred_check
    _
  $region7: #{decoder_block_forward.1} parent=0 // pred_check_branch
    %16 = sbr.rel (0) target = $region9
  $region8: #{decoder_block_forward.1} parent=0 // pred_region
    _
  $region9: #{decoder_block_forward.1} parent=0 // pred_fallthru
    _
  // Predicated region
  $region10: #{decoder_block_forward.1} parent=0 // pred_check
    _
  $region11: #{decoder_block_forward.1} parent=0 // pred_check_branch
    %18 = sbr.rel (0) target = $region13
  $region12: #{decoder_block_forward.1} parent=0 // pred_region
    _
  $region13: #{decoder_block_forward.1} parent=0 // pred_fallthru
    _
  // Predicated region
  $region14: #{decoder_block_forward.1} parent=0 // pred_check
    _
  $region15: #{decoder_block_forward.1} parent=0 // pred_check_branch
    %20 = sbr.rel (0) target = $region17
  $region16: #{decoder_block_forward.1} parent=0 // pred_region
    _
  $region17: #{decoder_block_forward.1} parent=0 // pred_fallthru
    _
  // Predicated region
  $region18: #{decoder_block_forward.1} parent=0 // pred_check
    _
  $region19: #{decoder_block_forward.1} parent=0 // pred_check_branch
    %22 = sbr.rel (0) target = $region21
  $region20: #{decoder_block_forward.1} parent=0 // pred_region
    _
  $region21: #{decoder_block_forward.1} parent=0 // pred_fallthru
    _
  // Predicated region
  $region22: #{decoder_block_forward.1} parent=0 // pred_check
    _
  $region23: #{decoder_block_forward.1} parent=0 // pred_check_branch
    %24 = sbr.rel (0) target = $region25
  $region24: #{decoder_block_forward.1} parent=0 // pred_region
    _
  $region25: #{decoder_block_forward.1} parent=0 // pred_fallthru
    _
  // Predicated region
  $region26: #{decoder_block_forward.1} parent=0 // pred_check
    _
  $region27: #{decoder_block_forward.1} parent=0 // pred_check_branch
    %26 = sbr.rel (0) target = $region29
  $region28: #{decoder_block_forward.1} parent=0 // pred_region
    _
  $region29: #{decoder_block_forward.1} parent=0 // pred_fallthru
    _
  // Predicated region
  $region30: #{decoder_block_forward.1} parent=0 // pred_check
    _
  $region31: #{decoder_block_forward.1} parent=0 // pred_check_branch
    %28 = sbr.rel (0) target = $region33
  $region32: #{decoder_block_forward.1} parent=0 // pred_region
    _
  $region33: #{decoder_block_forward.1} parent=0 // pred_fallthru
    _
  %v30 = vld [vmem:[%s0] sm:$0xf]
  %v31 = vld [vmem:[%s0 + $0x4] sm:$0xf]
  %v32 = vld [vmem:[%s1] sm:$0xf]
  %v33 = vld [vmem:[%s1 + $0x4] sm:$0xf]
  %v34 = vld [vmem:[%s1 + $0x8] sm:$0xf]
  %v35 = vld [vmem:[%s1 + $0xc] sm:$0xf]
  %v36 = vld [vmem:[%s7] sm:$0xf]
  %v37 = vld [vmem:[%s2] sm:$0xf]
  %v38 = vld [vmem:[%s2 + $0x4] sm:$0xf]
  %v39 = vld [vmem:[%s2 + $0x8] sm:$0xf]
  %v40 = vld [vmem:[%s2 + $0xc] sm:$0xf]
  %v45 = vunpack.c.l.b16 %v37
  %v46 = vunpack.c.l.b16 %v38
  %v47 = vunpack.c.l.b16 %v39
  %v48 = vunpack.c.l.b16 %v40
  %v49 = vpack.c.b16 %v46, %v45
  %v50 = vpack.c.b16 %v48, %v47
  %v53 = vunpack.c.l.b16 %v30
  %v54 = vunpack.c.l.b16 %v31
  %v55 = vpack.c.b16 %v54, %v53
  %vm57 = vcmask 130048
  %v59 = vsel %vm57, %v49, 0
  %v62 = vsel %vm57, %v50, 0
  %64 = vmatprep.subr.bf16.mxu0 0
  %65 = vmatpush1.bf16.msra.mxu0 %v55
  %66 = vmatprep.subr.bf16.mxu0 0
  %67 = vmatpush1.bf16.msra.mxu0 0
  %68 = vmatprep.subr.bf16.mxu0 0
  %69 = vmatpush1.bf16.msra.mxu0 0
  %70 = vmatprep.subr.bf16.mxu0 0
  %71 = vmatpush1.bf16.msra.mxu0 0
  %72 = vmatprep.subr.bf16.mxu0 0
  %73 = vmatpush1.bf16.msra.mxu0 0
  %74 = vmatprep.subr.bf16.mxu0 0
  %75 = vmatpush1.bf16.msra.mxu0 0
  %76 = vmatprep.subr.bf16.mxu0 0
  %77 = vmatpush1.bf16.msra.mxu0 0
  %78 = vmatprep.subr.bf16.mxu0 0
  %79 = vmatpush1.bf16.msra.mxu0 0
  %80 = vmatprep.subr.bf16.mxu0 0
  %81 = vmatpush1.bf16.msra.mxu0 0
  %82 = vmatprep.subr.bf16.mxu0 0
  %83 = vmatpush1.bf16.msra.mxu0 0
  %84 = vmatprep.subr.bf16.mxu0 0
  %85 = vmatpush1.bf16.msra.mxu0 0
  %86 = vmatprep.subr.bf16.mxu0 0
  %87 = vmatpush1.bf16.msra.mxu0 0
  %88 = vmatprep.subr.bf16.mxu0 0
  %89 = vmatpush1.bf16.msra.mxu0 0
  %90 = vmatprep.subr.bf16.mxu0 0
  %91 = vmatpush1.bf16.msra.mxu0 0
  %92 = vmatprep.subr.bf16.mxu0 0
  %93 = vmatpush1.bf16.msra.mxu0 0
  %94 = vmatprep.subr.bf16.mxu0 0
  %95 = vmatpush1.bf16.msra.mxu0 0
  %96 = vmatprep.mubr.bf16.mxu0 0
  %97 = vmatmul.mubr.bf16.gmra.mrb[0].mxu0 %v59
  %v98 = vpop.f32.mrb[0].mxu0
  %v99 = vadd.f32 0.0, %v98
  %v100 = vpop.f32.mrb[0].mxu0
  %v101 = vpop.f32.mrb[0].mxu0
  %v102 = vadd.f32 0.0, %v101
  %v103 = vpop.f32.mrb[0].mxu0
  %104 = vmatprep.mubr.bf16.mxu0 0
  %105 = vmatmul.mubr.bf16.gmra.mrb[0].mxu0 %v62
  %v106 = vpop.f32.mrb[0].mxu0
  %v107 = vadd.f32 0.0, %v106
  %v108 = vpop.f32.mrb[0].mxu0
  %v109 = vpop.f32.mrb[0].mxu0
  %v110 = vadd.f32 0.0, %v109
  %v111 = vpop.f32.mrb[0].mxu0
  %112 = vdwg.mxu0
  %v113 = vpack.c.bf16 %v102, %v99
  %v114 = vpack.c.bf16 %v110, %v107
  %v115 = vld [vmem:[%s4] sm:$0xf]
  %v116 = vld [vmem:[%s4 + $0x4] sm:$0xf]
  %v117 = vld [vmem:[%s4 + $0x8] sm:$0xf]
  %v118 = vld [vmem:[%s4 + $0xc] sm:$0xf]
  %s119 = scalar_lea.vmem %s2, 16
  %v120 = vld [vmem:[%s119] sm:$0xf]
  %v121 = vld [vmem:[%s119 + $0x4] sm:$0xf]
  %v122 = vld [vmem:[%s119 + $0x8] sm:$0xf]
  %v123 = vld [vmem:[%s119 + $0xc] sm:$0xf]
  %v128 = vunpack.c.l.b16 %v120
  %v129 = vunpack.c.l.b16 %v121
  %v130 = vunpack.c.l.b16 %v122
  %v131 = vunpack.c.l.b16 %v123
  %v132 = vpack.c.b16 %v129, %v128
  %v133 = vpack.c.b16 %v131, %v130
  %v135 = vsel %vm57, %v132, 0
  %v138 = vsel %vm57, %v133, 0
  %140 = vmatprep.subr.bf16.mxu0 0
  %141 = vmatpush1.bf16.msra.mxu0 %v55
  %142 = vmatprep.subr.bf16.mxu0 0
  %143 = vmatpush1.bf16.msra.mxu0 0
  %144 = vmatprep.subr.bf16.mxu0 0
  %145 = vmatpush1.bf16.msra.mxu0 0
  %146 = vmatprep.subr.bf16.mxu0 0
  %147 = vmatpush1.bf16.msra.mxu0 0
  %148 = vmatprep.subr.bf16.mxu0 0
  %149 = vmatpush1.bf16.msra.mxu0 0
  %150 = vmatprep.subr.bf16.mxu0 0
  %151 = vmatpush1.bf16.msra.mxu0 0
  %152 = vmatprep.subr.bf16.mxu0 0
  %153 = vmatpush1.bf16.msra.mxu0 0
  %154 = vmatprep.subr.bf16.mxu0 0
  %155 = vmatpush1.bf16.msra.mxu0 0
  %156 = vmatprep.subr.bf16.mxu0 0
  %157 = vmatpush1.bf16.msra.mxu0 0
  %158 = vmatprep.subr.bf16.mxu0 0
  %159 = vmatpush1.bf16.msra.mxu0 0
  %160 = vmatprep.subr.bf16.mxu0 0
  %161 = vmatpush1.bf16.msra.mxu0 0
  %162 = vmatprep.subr.bf16.mxu0 0
  %163 = vmatpush1.bf16.msra.mxu0 0
  %164 = vmatprep.subr.bf16.mxu0 0
  %165 = vmatpush1.bf16.msra.mxu0 0
  %166 = vmatprep.subr.bf16.mxu0 0
  %167 = vmatpush1.bf16.msra.mxu0 0
  %168 = vmatprep.subr.bf16.mxu0 0
  %169 = vmatpush1.bf16.msra.mxu0 0
  %170 = vmatprep.subr.bf16.mxu0 0
  %171 = vmatpush1.bf16.msra.mxu0 0
  %172 = vmatprep.mubr.bf16.mxu0 0
  %173 = vmatmul.mubr.bf16.gmra.mrb[0].mxu0 %v135
  %v174 = vpop.f32.mrb[0].mxu0
  %v175 = vadd.f32 0.0, %v174
  %v176 = vpop.f32.mrb[0].mxu0
  %v177 = vpop.f32.mrb[0].mxu0
  %v178 = vadd.f32 0.0, %v177
  %v179 = vpop.f32.mrb[0].mxu0
  %180 = vmatprep.mubr.bf16.mxu0 0
  %181 = vmatmul.mubr.bf16.gmra.mrb[0].mxu0 %v138
  %v182 = vpop.f32.mrb[0].mxu0
  %v183 = vadd.f32 0.0, %v182
  %v184 = vpop.f32.mrb[0].mxu0
  %v185 = vpop.f32.mrb[0].mxu0
  %v186 = vadd.f32 0.0, %v185
  %v187 = vpop.f32.mrb[0].mxu0
  %188 = vdwg.mxu0
  %v189 = vpack.c.bf16 %v178, %v175
  %v190 = vpack.c.bf16 %v186, %v183
  %s191 = scalar_lea.vmem %s4, 16
  %v192 = vld [vmem:[%s191] sm:$0xf]
  %v193 = vld [vmem:[%s191 + $0x4] sm:$0xf]
  %v194 = vld [vmem:[%s191 + $0x8] sm:$0xf]
  %v195 = vld [vmem:[%s191 + $0xc] sm:$0xf]
  %v200 = vunpack.c.l.b16 %v192
  %v201 = vunpack.c.l.b16 %v193
  %v202 = vunpack.c.l.b16 %v194
  %v203 = vunpack.c.l.b16 %v195
  %v204 = vpack.c.b16 %v201, %v200
  %v205 = vpack.c.b16 %v203, %v202
  %vm208 = vcmask 261120
  %v210 = vsel %vm208, %v189, 0
  %v213 = vsel %vm208, %v190, 0
  %215 = vmatprep.subr.bf16.mxu0 0
  %216 = vmatpush1.bf16.msra.mxu0 %v204
  %217 = vmatprep.subr.bf16.mxu0 0
  %218 = vmatpush1.bf16.msra.mxu0 %v205
  %219 = vmatprep.subr.bf16.mxu0 0
  %220 = vmatpush1.bf16.msra.mxu0 0
  %221 = vmatprep.subr.bf16.mxu0 0
  %222 = vmatpush1.bf16.msra.mxu0 0
  %223 = vmatprep.subr.bf16.mxu0 0
  %224 = vmatpush1.bf16.msra.mxu0 0
  %225 = vmatprep.subr.bf16.mxu0 0
  %226 = vmatpush1.bf16.msra.mxu0 0
  %227 = vmatprep.subr.bf16.mxu0 0
  %228 = vmatpush1.bf16.msra.mxu0 0
  %229 = vmatprep.subr.bf16.mxu0 0
  %230 = vmatpush1.bf16.msra.mxu0 0
  %231 = vmatprep.subr.bf16.mxu0 0
  %232 = vmatpush1.bf16.msra.mxu0 0
  %233 = vmatprep.subr.bf16.mxu0 0
  %234 = vmatpush1.bf16.msra.mxu0 0
  %235 = vmatprep.subr.bf16.mxu0 0
  %236 = vmatpush1.bf16.msra.mxu0 0
  %237 = vmatprep.subr.bf16.mxu0 0
  %238 = vmatpush1.bf16.msra.mxu0 0
  %239 = vmatprep.subr.bf16.mxu0 0
  %240 = vmatpush1.bf16.msra.mxu0 0
  %241 = vmatprep.subr.bf16.mxu0 0
  %242 = vmatpush1.bf16.msra.mxu0 0
  %243 = vmatprep.subr.bf16.mxu0 0
  %244 = vmatpush1.bf16.msra.mxu0 0
  %245 = vmatprep.subr.bf16.mxu0 0
  %246 = vmatpush1.bf16.msra.mxu0 0
  %247 = vmatprep.mubr.bf16.mxu0 0
  %248 = vmatmul.mubr.bf16.gmra.mrb[0].mxu0 %v210
  %v249 = vpop.f32.mrb[0].mxu0
  %v250 = vadd.f32 0.0, %v249
  %v251 = vpop.f32.mrb[0].mxu0
  %v252 = vpop.f32.mrb[0].mxu0
  %v253 = vadd.f32 0.0, %v252
  %v254 = vpop.f32.mrb[0].mxu0
  %255 = vmatprep.mubr.bf16.mxu0 0
  %256 = vmatmul.mubr.bf16.gmra.mrb[0].mxu0 %v213
  %v257 = vpop.f32.mrb[0].mxu0
  %v258 = vadd.f32 0.0, %v257
  %v259 = vpop.f32.mrb[0].mxu0
  %v260 = vpop.f32.mrb[0].mxu0
  %v261 = vadd.f32 0.0, %v260
  %v262 = vpop.f32.mrb[0].mxu0
  %263 = vdwg.mxu0
  %v268 = vunpack.c.l.b16 %v115
  %v269 = vunpack.c.l.b16 %v116
  %v270 = vunpack.c.l.b16 %v117
  %v271 = vunpack.c.l.b16 %v118
  %v272 = vpack.c.b16 %v269, %v268
  %v273 = vpack.c.b16 %v271, %v270
  %v277 = vsel %vm208, %v113, 0
  %v280 = vsel %vm208, %v114, 0
  %282 = vmatprep.subr.bf16.mxu0 0
  %283 = vmatpush1.bf16.msra.mxu0 %v272
  %284 = vmatprep.subr.bf16.mxu0 0
  %285 = vmatpush1.bf16.msra.mxu0 %v273
  %286 = vmatprep.subr.bf16.mxu0 0
  %287 = vmatpush1.bf16.msra.mxu0 0
  %288 = vmatprep.subr.bf16.mxu0 0
  %289 = vmatpush1.bf16.msra.mxu0 0
  %290 = vmatprep.subr.bf16.mxu0 0
  %291 = vmatpush1.bf16.msra.mxu0 0
  %292 = vmatprep.subr.bf16.mxu0 0
  %293 = vmatpush1.bf16.msra.mxu0 0
  %294 = vmatprep.subr.bf16.mxu0 0
  %295 = vmatpush1.bf16.msra.mxu0 0
  %296 = vmatprep.subr.bf16.mxu0 0
  %297 = vmatpush1.bf16.msra.mxu0 0
  %298 = vmatprep.subr.bf16.mxu0 0
  %299 = vmatpush1.bf16.msra.mxu0 0
  %300 = vmatprep.subr.bf16.mxu0 0
  %301 = vmatpush1.bf16.msra.mxu0 0
  %302 = vmatprep.subr.bf16.mxu0 0
  %303 = vmatpush1.bf16.msra.mxu0 0
  %304 = vmatprep.subr.bf16.mxu0 0
  %305 = vmatpush1.bf16.msra.mxu0 0
  %306 = vmatprep.subr.bf16.mxu0 0
  %307 = vmatpush1.bf16.msra.mxu0 0
  %308 = vmatprep.subr.bf16.mxu0 0
  %309 = vmatpush1.bf16.msra.mxu0 0
  %310 = vmatprep.subr.bf16.mxu0 0
  %311 = vmatpush1.bf16.msra.mxu0 0
  %312 = vmatprep.subr.bf16.mxu0 0
  %313 = vmatpush1.bf16.msra.mxu0 0
  %314 = vmatprep.mubr.bf16.mxu0 0
  %315 = vmatmul.mubr.bf16.gmra.mrb[0].mxu0 %v277
  %v316 = vpop.f32.mrb[0].mxu0
  %v317 = vadd.f32 %v250, %v316
  %v318 = vpop.f32.mrb[0].mxu0
  %v319 = vpop.f32.mrb[0].mxu0
  %v320 = vadd.f32 %v253, %v319
  %v321 = vpop.f32.mrb[0].mxu0
  %322 = vmatprep.mubr.bf16.mxu0 0
  %323 = vmatmul.mubr.bf16.gmra.mrb[0].mxu0 %v280
  %v324 = vpop.f32.mrb[0].mxu0
  %v325 = vadd.f32 %v258, %v324
  %v326 = vpop.f32.mrb[0].mxu0
  %v327 = vpop.f32.mrb[0].mxu0
  %v328 = vadd.f32 %v261, %v327
  %v329 = vpop.f32.mrb[0].mxu0
  %330 = vdwg.mxu0
  %s331 = scalar_lea.vmem %s2, 32
  %v332 = vld [vmem:[%s331] sm:$0xf]
  %v333 = vld [vmem:[%s331 + $0x4] sm:$0xf]
  %v334 = vld [vmem:[%s331 + $0x8] sm:$0xf]
  %v335 = vld [vmem:[%s331 + $0xc] sm:$0xf]
  %v340 = vunpack.c.l.b16 %v332
  %v341 = vunpack.c.l.b16 %v333
  %v342 = vunpack.c.l.b16 %v334
  %v343 = vunpack.c.l.b16 %v335
  %v344 = vpack.c.b16 %v341, %v340
  %v345 = vpack.c.b16 %v343, %v342
  %v347 = vsel %vm57, %v344, 0
  %v350 = vsel %vm57, %v345, 0
  %352 = vmatprep.subr.bf16.mxu0 0
  %353 = vmatpush1.bf16.msra.mxu0 %v55
  %354 = vmatprep.subr.bf16.mxu0 0
  %355 = vmatpush1.bf16.msra.mxu0 0
  %356 = vmatprep.subr.bf16.mxu0 0
  %357 = vmatpush1.bf16.msra.mxu0 0
  %358 = vmatprep.subr.bf16.mxu0 0
  %359 = vmatpush1.bf16.msra.mxu0 0
  %360 = vmatprep.subr.bf16.mxu0 0
  %361 = vmatpush1.bf16.msra.mxu0 0
  %362 = vmatprep.subr.bf16.mxu0 0
  %363 = vmatpush1.bf16.msra.mxu0 0
  %364 = vmatprep.subr.bf16.mxu0 0
  %365 = vmatpush1.bf16.msra.mxu0 0
  %366 = vmatprep.subr.bf16.mxu0 0
  %367 = vmatpush1.bf16.msra.mxu0 0
  %368 = vmatprep.subr.bf16.mxu0 0
  %369 = vmatpush1.bf16.msra.mxu0 0
  %370 = vmatprep.subr.bf16.mxu0 0
  %371 = vmatpush1.bf16.msra.mxu0 0
  %372 = vmatprep.subr.bf16.mxu0 0
  %373 = vmatpush1.bf16.msra.mxu0 0
  %374 = vmatprep.subr.bf16.mxu0 0
  %375 = vmatpush1.bf16.msra.mxu0 0
  %376 = vmatprep.subr.bf16.mxu0 0
  %377 = vmatpush1.bf16.msra.mxu0 0
  %378 = vmatprep.subr.bf16.mxu0 0
  %379 = vmatpush1.bf16.msra.mxu0 0
  %380 = vmatprep.subr.bf16.mxu0 0
  %381 = vmatpush1.bf16.msra.mxu0 0
  %382 = vmatprep.subr.bf16.mxu0 0
  %383 = vmatpush1.bf16.msra.mxu0 0
  %384 = vmatprep.mubr.bf16.mxu0 0
  %385 = vmatmul.mubr.bf16.gmra.mrb[0].mxu0 %v347
  %v386 = vpop.f32.mrb[0].mxu0
  %v387 = vadd.f32 0.0, %v386
  %v388 = vpop.f32.mrb[0].mxu0
  %v389 = vpop.f32.mrb[0].mxu0
  %v390 = vadd.f32 0.0, %v389
  %v391 = vpop.f32.mrb[0].mxu0
  %392 = vmatprep.mubr.bf16.mxu0 0
  %393 = vmatmul.mubr.bf16.gmra.mrb[0].mxu0 %v350
  %v394 = vpop.f32.mrb[0].mxu0
  %v395 = vadd.f32 0.0, %v394
  %v396 = vpop.f32.mrb[0].mxu0
  %v397 = vpop.f32.mrb[0].mxu0
  %v398 = vadd.f32 0.0, %v397
  %v399 = vpop.f32.mrb[0].mxu0
  %400 = vdwg.mxu0
  %v401 = vpack.c.bf16 %v390, %v387
  %v402 = vpack.c.bf16 %v398, %v395
  %s403 = scalar_lea.vmem %s4, 32
  %v404 = vld [vmem:[%s403] sm:$0xf]
  %v405 = vld [vmem:[%s403 + $0x4] sm:$0xf]
  %v406 = vld [vmem:[%s403 + $0x8] sm:$0xf]
  %v407 = vld [vmem:[%s403 + $0xc] sm:$0xf]
  %v412 = vunpack.c.l.b16 %v404
  %v413 = vunpack.c.l.b16 %v405
  %v414 = vunpack.c.l.b16 %v406
  %v415 = vunpack.c.l.b16 %v407
  %v416 = vpack.c.b16 %v413, %v412
  %v417 = vpack.c.b16 %v415, %v414
  %v421 = vsel %vm208, %v401, 0
  %v424 = vsel %vm208, %v402, 0
  %426 = vmatprep.subr.bf16.mxu0 0
  %427 = vmatpush1.bf16.msra.mxu0 %v416
  %428 = vmatprep.subr.bf16.mxu0 0
  %429 = vmatpush1.bf16.msra.mxu0 %v417
  %430 = vmatprep.subr.bf16.mxu0 0
  %431 = vmatpush1.bf16.msra.mxu0 0
  %432 = vmatprep.subr.bf16.mxu0 0
  %433 = vmatpush1.bf16.msra.mxu0 0
  %434 = vmatprep.subr.bf16.mxu0 0
  %435 = vmatpush1.bf16.msra.mxu0 0
  %436 = vmatprep.subr.bf16.mxu0 0
  %437 = vmatpush1.bf16.msra.mxu0 0
  %438 = vmatprep.subr.bf16.mxu0 0
  %439 = vmatpush1.bf16.msra.mxu0 0
  %440 = vmatprep.subr.bf16.mxu0 0
  %441 = vmatpush1.bf16.msra.mxu0 0
  %442 = vmatprep.subr.bf16.mxu0 0
  %443 = vmatpush1.bf16.msra.mxu0 0
  %444 = vmatprep.subr.bf16.mxu0 0
  %445 = vmatpush1.bf16.msra.mxu0 0
  %446 = vmatprep.subr.bf16.mxu0 0
  %447 = vmatpush1.bf16.msra.mxu0 0
  %448 = vmatprep.subr.bf16.mxu0 0
  %449 = vmatpush1.bf16.msra.mxu0 0
  %450 = vmatprep.subr.bf16.mxu0 0
  %451 = vmatpush1.bf16.msra.mxu0 0
  %452 = vmatprep.subr.bf16.mxu0 0
  %453 = vmatpush1.bf16.msra.mxu0 0
  %454 = vmatprep.subr.bf16.mxu0 0
  %455 = vmatpush1.bf16.msra.mxu0 0
  %456 = vmatprep.subr.bf16.mxu0 0
  %457 = vmatpush1.bf16.msra.mxu0 0
  %458 = vmatprep.mubr.bf16.mxu0 0
  %459 = vmatmul.mubr.bf16.gmra.mrb[0].mxu0 %v421
  %v460 = vpop.f32.mrb[0].mxu0
  %v461 = vadd.f32 0.0, %v460
  %v462 = vpop.f32.mrb[0].mxu0
  %v463 = vpop.f32.mrb[0].mxu0
  %v464 = vadd.f32 0.0, %v463
  %v465 = vpop.f32.mrb[0].mxu0
  %466 = vmatprep.mubr.bf16.mxu0 0
  %467 = vmatmul.mubr.bf16.gmra.mrb[0].mxu0 %v424
  %v468 = vpop.f32.mrb[0].mxu0
  %v469 = vadd.f32 0.0, %v468
  %v470 = vpop.f32.mrb[0].mxu0
  %v471 = vpop.f32.mrb[0].mxu0
  %v472 = vadd.f32 0.0, %v471
  %v473 = vpop.f32.mrb[0].mxu0
  %474 = vdwg.mxu0
  %v475 = vadd.f32 %v317, %v461
  %v476 = vadd.f32 %v320, %v464
  %v477 = vadd.f32 %v325, %v469
  %v478 = vadd.f32 %v328, %v472
  %v479 = vld [vmem:[%s3] sm:$0xf]
  %v480 = vld [vmem:[%s3 + $0x4] sm:$0xf]
  %v481 = vld [vmem:[%s3 + $0x8] sm:$0xf]
  %v482 = vld [vmem:[%s3 + $0xc] sm:$0xf]
  %v487 = vunpack.c.l.b16 %v479
  %v488 = vunpack.c.l.b16 %v480
  %v489 = vunpack.c.l.b16 %v481
  %v490 = vunpack.c.l.b16 %v482
  %v491 = vpack.c.b16 %v488, %v487
  %v492 = vpack.c.b16 %v490, %v489
  %v497 = vunpack.c.l.b16 %v32
  %v498 = vunpack.c.l.b16 %v33
  %v499 = vunpack.c.l.b16 %v34
  %v500 = vunpack.c.l.b16 %v35
  %v501 = vpack.c.b16 %v498, %v497
  %v502 = vpack.c.b16 %v500, %v499
  %v506 = vsel %vm208, %v491, 0
  %v509 = vsel %vm208, %v492, 0
  %511 = vmatprep.subr.bf16.mxu0 0
  %512 = vmatpush1.bf16.msra.mxu0 %v501
  %513 = vmatprep.subr.bf16.mxu0 0
  %514 = vmatpush1.bf16.msra.mxu0 %v502
  %515 = vmatprep.subr.bf16.mxu0 0
  %516 = vmatpush1.bf16.msra.mxu0 0
  %517 = vmatprep.subr.bf16.mxu0 0
  %518 = vmatpush1.bf16.msra.mxu0 0
  %519 = vmatprep.subr.bf16.mxu0 0
  %520 = vmatpush1.bf16.msra.mxu0 0
  %521 = vmatprep.subr.bf16.mxu0 0
  %522 = vmatpush1.bf16.msra.mxu0 0
  %523 = vmatprep.subr.bf16.mxu0 0
  %524 = vmatpush1.bf16.msra.mxu0 0
  %525 = vmatprep.subr.bf16.mxu0 0
  %526 = vmatpush1.bf16.msra.mxu0 0
  %527 = vmatprep.subr.bf16.mxu0 0
  %528 = vmatpush1.bf16.msra.mxu0 0
  %529 = vmatprep.subr.bf16.mxu0 0
  %530 = vmatpush1.bf16.msra.mxu0 0
  %531 = vmatprep.subr.bf16.mxu0 0
  %532 = vmatpush1.bf16.msra.mxu0 0
  %533 = vmatprep.subr.bf16.mxu0 0
  %534 = vmatpush1.bf16.msra.mxu0 0
  %535 = vmatprep.subr.bf16.mxu0 0
  %536 = vmatpush1.bf16.msra.mxu0 0
  %537 = vmatprep.subr.bf16.mxu0 0
  %538 = vmatpush1.bf16.msra.mxu0 0
  %539 = vmatprep.subr.bf16.mxu0 0
  %540 = vmatpush1.bf16.msra.mxu0 0
  %541 = vmatprep.subr.bf16.mxu0 0
  %542 = vmatpush1.bf16.msra.mxu0 0
  %543 = vmatprep.mubr.bf16.mxu0 0
  %544 = vmatmul.mubr.bf16.gmra.mrb[0].mxu0 %v506
  %v545 = vpop.f32.mrb[0].mxu0
  %v546 = vadd.f32 0.0, %v545
  %v547 = vpop.f32.mrb[0].mxu0
  %v548 = vpop.f32.mrb[0].mxu0
  %v549 = vadd.f32 0.0, %v548
  %v550 = vpop.f32.mrb[0].mxu0
  %551 = vmatprep.mubr.bf16.mxu0 0
  %552 = vmatmul.mubr.bf16.gmra.mrb[0].mxu0 %v509
  %v553 = vpop.f32.mrb[0].mxu0
  %v554 = vadd.f32 0.0, %v553
  %v555 = vpop.f32.mrb[0].mxu0
  %v556 = vpop.f32.mrb[0].mxu0
  %v557 = vadd.f32 0.0, %v556
  %v558 = vpop.f32.mrb[0].mxu0
  %559 = vdwg.mxu0
  %v560 = vpack.c.bf16 %v549, %v546
  %v561 = vpack.c.bf16 %v557, %v554
  %v562 = vld [vmem:[%s5] sm:$0xf]
  %v563 = vld [vmem:[%s5 + $0x4] sm:$0xf]
  %v564 = vld [vmem:[%s5 + $0x8] sm:$0xf]
  %v565 = vld [vmem:[%s5 + $0xc] sm:$0xf]
  %v566 = vld [vmem:[%s5 + $0x10] sm:$0xf]
  %v567 = vld [vmem:[%s5 + $0x14] sm:$0xf]
  %v568 = vld [vmem:[%s5 + $0x18] sm:$0xf]
  %v569 = vld [vmem:[%s5 + $0x1c] sm:$0xf]
  %v578 = vunpack.c.l.b16 %v562
  %v579 = vunpack.c.l.b16 %v563
  %v580 = vunpack.c.l.b16 %v564
  %v581 = vunpack.c.l.b16 %v565
  %v582 = vunpack.c.l.b16 %v566
  %v583 = vunpack.c.l.b16 %v567
  %v584 = vunpack.c.l.b16 %v568
  %v585 = vunpack.c.l.b16 %v569
  %v586 = vpack.c.b16 %v579, %v578
  %v587 = vpack.c.b16 %v581, %v580
  %v588 = vpack.c.b16 %v583, %v582
  %v589 = vpack.c.b16 %v585, %v584
  %vm594 = vcmask 523264
  %v596 = vsel %vm594, %v560, 0
  %v599 = vsel %vm594, %v561, 0
  %601 = vmatprep.subr.bf16.mxu0 0
  %602 = vmatpush1.bf16.msra.mxu0 %v586
  %603 = vmatprep.subr.bf16.mxu0 0
  %604 = vmatpush1.bf16.msra.mxu0 %v587
  %605 = vmatprep.subr.bf16.mxu0 0
  %606 = vmatpush1.bf16.msra.mxu0 %v588
  %607 = vmatprep.subr.bf16.mxu0 0
  %608 = vmatpush1.bf16.msra.mxu0 %v589
  %609 = vmatprep.subr.bf16.mxu0 0
  %610 = vmatpush1.bf16.msra.mxu0 0
  %611 = vmatprep.subr.bf16.mxu0 0
  %612 = vmatpush1.bf16.msra.mxu0 0
  %613 = vmatprep.subr.bf16.mxu0 0
  %614 = vmatpush1.bf16.msra.mxu0 0
  %615 = vmatprep.subr.bf16.mxu0 0
  %616 = vmatpush1.bf16.msra.mxu0 0
  %617 = vmatprep.subr.bf16.mxu0 0
  %618 = vmatpush1.bf16.msra.mxu0 0
  %619 = vmatprep.subr.bf16.mxu0 0
  %620 = vmatpush1.bf16.msra.mxu0 0
  %621 = vmatprep.subr.bf16.mxu0 0
  %622 = vmatpush1.bf16.msra.mxu0 0
  %623 = vmatprep.subr.bf16.mxu0 0
  %624 = vmatpush1.bf16.msra.mxu0 0
  %625 = vmatprep.subr.bf16.mxu0 0
  %626 = vmatpush1.bf16.msra.mxu0 0
  %627 = vmatprep.subr.bf16.mxu0 0
  %628 = vmatpush1.bf16.msra.mxu0 0
  %629 = vmatprep.subr.bf16.mxu0 0
  %630 = vmatpush1.bf16.msra.mxu0 0
  %631 = vmatprep.subr.bf16.mxu0 0
  %632 = vmatpush1.bf16.msra.mxu0 0
  %633 = vmatprep.mubr.bf16.mxu0 0
  %634 = vmatmul.mubr.bf16.gmra.mrb[0].mxu0 %v596
  %v635 = vpop.f32.mrb[0].mxu0
  %v636 = vadd.f32 0.0, %v635
  %v637 = vpop.f32.mrb[0].mxu0
  %v638 = vpop.f32.mrb[0].mxu0
  %v639 = vadd.f32 0.0, %v638
  %v640 = vpop.f32.mrb[0].mxu0
  %641 = vmatprep.mubr.bf16.mxu0 0
  %642 = vmatmul.mubr.bf16.gmra.mrb[0].mxu0 %v599
  %v643 = vpop.f32.mrb[0].mxu0
  %v644 = vadd.f32 0.0, %v643
  %v645 = vpop.f32.mrb[0].mxu0
  %v646 = vpop.f32.mrb[0].mxu0
  %v647 = vadd.f32 0.0, %v646
  %v648 = vpop.f32.mrb[0].mxu0
  %649 = vdwg.mxu0
  %v650 = vadd.f32 %v475, %v636
  %v651 = vadd.f32 %v476, %v639
  %v652 = vadd.f32 %v477, %v644
  %v653 = vadd.f32 %v478, %v647
  %s654 = scalar_lea.vmem %s5, 32
  %v655 = vld [vmem:[%s654] sm:$0xf]
  %v656 = vld [vmem:[%s654 + $0x4] sm:$0xf]
  %v657 = vld [vmem:[%s654 + $0x8] sm:$0xf]
  %v658 = vld [vmem:[%s654 + $0xc] sm:$0xf]
  %v659 = vld [vmem:[%s654 + $0x10] sm:$0xf]
  %v660 = vld [vmem:[%s654 + $0x14] sm:$0xf]
  %v661 = vld [vmem:[%s654 + $0x18] sm:$0xf]
  %v662 = vld [vmem:[%s654 + $0x1c] sm:$0xf]
  %v671 = vunpack.c.l.b16 %v655
  %v672 = vunpack.c.l.b16 %v656
  %v673 = vunpack.c.l.b16 %v657
  %v674 = vunpack.c.l.b16 %v658
  %v675 = vunpack.c.l.b16 %v659
  %v676 = vunpack.c.l.b16 %v660
  %v677 = vunpack.c.l.b16 %v661
  %v678 = vunpack.c.l.b16 %v662
  %v679 = vpack.c.b16 %v672, %v671
  %v680 = vpack.c.b16 %v674, %v673
  %v681 = vpack.c.b16 %v676, %v675
  %v682 = vpack.c.b16 %v678, %v677
  %v688 = vsel %vm594, %v501, 0
  %v691 = vsel %vm594, %v502, 0
  %693 = vmatprep.subr.bf16.mxu0 0
  %694 = vmatpush1.bf16.msra.mxu0 %v679
  %695 = vmatprep.subr.bf16.mxu0 0
  %696 = vmatpush1.bf16.msra.mxu0 %v680
  %697 = vmatprep.subr.bf16.mxu0 0
  %698 = vmatpush1.bf16.msra.mxu0 %v681
  %699 = vmatprep.subr.bf16.mxu0 0
  %700 = vmatpush1.bf16.msra.mxu0 %v682
  %701 = vmatprep.subr.bf16.mxu0 0
  %702 = vmatpush1.bf16.msra.mxu0 0
  %703 = vmatprep.subr.bf16.mxu0 0
  %704 = vmatpush1.bf16.msra.mxu0 0
  %705 = vmatprep.subr.bf16.mxu0 0
  %706 = vmatpush1.bf16.msra.mxu0 0
  %707 = vmatprep.subr.bf16.mxu0 0
  %708 = vmatpush1.bf16.msra.mxu0 0
  %709 = vmatprep.subr.bf16.mxu0 0
  %710 = vmatpush1.bf16.msra.mxu0 0
  %711 = vmatprep.subr.bf16.mxu0 0
  %712 = vmatpush1.bf16.msra.mxu0 0
  %713 = vmatprep.subr.bf16.mxu0 0
  %714 = vmatpush1.bf16.msra.mxu0 0
  %715 = vmatprep.subr.bf16.mxu0 0
  %716 = vmatpush1.bf16.msra.mxu0 0
  %717 = vmatprep.subr.bf16.mxu0 0
  %718 = vmatpush1.bf16.msra.mxu0 0
  %719 = vmatprep.subr.bf16.mxu0 0
  %720 = vmatpush1.bf16.msra.mxu0 0
  %721 = vmatprep.subr.bf16.mxu0 0
  %722 = vmatpush1.bf16.msra.mxu0 0
  %723 = vmatprep.subr.bf16.mxu0 0
  %724 = vmatpush1.bf16.msra.mxu0 0
  %725 = vmatprep.mubr.bf16.mxu0 0
  %726 = vmatmul.mubr.bf16.gmra.mrb[0].mxu0 %v688
  %v727 = vpop.f32.mrb[0].mxu0
  %v728 = vadd.f32 0.0, %v727
  %v729 = vpop.f32.mrb[0].mxu0
  %v730 = vpop.f32.mrb[0].mxu0
  %v731 = vadd.f32 0.0, %v730
  %v732 = vpop.f32.mrb[0].mxu0
  %733 = vmatprep.mubr.bf16.mxu0 0
  %734 = vmatmul.mubr.bf16.gmra.mrb[0].mxu0 %v691
  %v735 = vpop.f32.mrb[0].mxu0
  %v736 = vadd.f32 0.0, %v735
  %v737 = vpop.f32.mrb[0].mxu0
  %v738 = vpop.f32.mrb[0].mxu0
  %v739 = vadd.f32 0.0, %v738
  %v740 = vpop.f32.mrb[0].mxu0
  %741 = vdwg.mxu0
  %v742 = vadd.f32 %v650, %v728
  %v743 = vadd.f32 %v651, %v731
  %v744 = vadd.f32 %v652, %v736
  %v745 = vadd.f32 %v653, %v739
  %s746 = scalar_lea.vmem %s3, 32
  %v747 = vld [vmem:[%s746] sm:$0xf]
  %v748 = vld [vmem:[%s746 + $0x4] sm:$0xf]
  %v749 = vld [vmem:[%s746 + $0x8] sm:$0xf]
  %v750 = vld [vmem:[%s746 + $0xc] sm:$0xf]
  %v755 = vunpack.c.l.b16 %v747
  %v756 = vunpack.c.l.b16 %v748
  %v757 = vunpack.c.l.b16 %v749
  %v758 = vunpack.c.l.b16 %v750
  %v759 = vpack.c.b16 %v756, %v755
  %v760 = vpack.c.b16 %v758, %v757
  %v762 = vsel %vm208, %v759, 0
  %v765 = vsel %vm208, %v760, 0
  %767 = vmatprep.subr.bf16.mxu0 0
  %768 = vmatpush1.bf16.msra.mxu0 %v501
  %769 = vmatprep.subr.bf16.mxu0 0
  %770 = vmatpush1.bf16.msra.mxu0 %v502
  %771 = vmatprep.subr.bf16.mxu0 0
  %772 = vmatpush1.bf16.msra.mxu0 0
  %773 = vmatprep.subr.bf16.mxu0 0
  %774 = vmatpush1.bf16.msra.mxu0 0
  %775 = vmatprep.subr.bf16.mxu0 0
  %776 = vmatpush1.bf16.msra.mxu0 0
  %777 = vmatprep.subr.bf16.mxu0 0
  %778 = vmatpush1.bf16.msra.mxu0 0
  %779 = vmatprep.subr.bf16.mxu0 0
  %780 = vmatpush1.bf16.msra.mxu0 0
  %781 = vmatprep.subr.bf16.mxu0 0
  %782 = vmatpush1.bf16.msra.mxu0 0
  %783 = vmatprep.subr.bf16.mxu0 0
  %784 = vmatpush1.bf16.msra.mxu0 0
  %785 = vmatprep.subr.bf16.mxu0 0
  %786 = vmatpush1.bf16.msra.mxu0 0
  %787 = vmatprep.subr.bf16.mxu0 0
  %788 = vmatpush1.bf16.msra.mxu0 0
  %789 = vmatprep.subr.bf16.mxu0 0
  %790 = vmatpush1.bf16.msra.mxu0 0
  %791 = vmatprep.subr.bf16.mxu0 0
  %792 = vmatpush1.bf16.msra.mxu0 0
  %793 = vmatprep.subr.bf16.mxu0 0
  %794 = vmatpush1.bf16.msra.mxu0 0
  %795 = vmatprep.subr.bf16.mxu0 0
  %796 = vmatpush1.bf16.msra.mxu0 0
  %797 = vmatprep.subr.bf16.mxu0 0
  %798 = vmatpush1.bf16.msra.mxu0 0
  %799 = vmatprep.mubr.bf16.mxu0 0
  %800 = vmatmul.mubr.bf16.gmra.mrb[0].mxu0 %v762
  %v801 = vpop.f32.mrb[0].mxu0
  %v802 = vadd.f32 0.0, %v801
  %v803 = vpop.f32.mrb[0].mxu0
  %v804 = vpop.f32.mrb[0].mxu0
  %v805 = vadd.f32 0.0, %v804
  %v806 = vpop.f32.mrb[0].mxu0
  %807 = vmatprep.mubr.bf16.mxu0 0
  %808 = vmatmul.mubr.bf16.gmra.mrb[0].mxu0 %v765
  %v809 = vpop.f32.mrb[0].mxu0
  %v810 = vadd.f32 0.0, %v809
  %v811 = vpop.f32.mrb[0].mxu0
  %v812 = vpop.f32.mrb[0].mxu0
  %v813 = vadd.f32 0.0, %v812
  %v814 = vpop.f32.mrb[0].mxu0
  %815 = vdwg.mxu0
  %v816 = vpack.c.bf16 %v805, %v802
  %v817 = vpack.c.bf16 %v813, %v810
  %s818 = scalar_lea.vmem %s5, 64
  %v819 = vld [vmem:[%s818] sm:$0xf]
  %v820 = vld [vmem:[%s818 + $0x4] sm:$0xf]
  %v821 = vld [vmem:[%s818 + $0x8] sm:$0xf]
  %v822 = vld [vmem:[%s818 + $0xc] sm:$0xf]
  %v823 = vld [vmem:[%s818 + $0x10] sm:$0xf]
  %v824 = vld [vmem:[%s818 + $0x14] sm:$0xf]
  %v825 = vld [vmem:[%s818 + $0x18] sm:$0xf]
  %v826 = vld [vmem:[%s818 + $0x1c] sm:$0xf]
  %v835 = vunpack.c.l.b16 %v819
  %v836 = vunpack.c.l.b16 %v820
  %v837 = vunpack.c.l.b16 %v821
  %v838 = vunpack.c.l.b16 %v822
  %v839 = vunpack.c.l.b16 %v823
  %v840 = vunpack.c.l.b16 %v824
  %v841 = vunpack.c.l.b16 %v825
  %v842 = vunpack.c.l.b16 %v826
  %v843 = vpack.c.b16 %v836, %v835
  %v844 = vpack.c.b16 %v838, %v837
  %v845 = vpack.c.b16 %v840, %v839
  %v846 = vpack.c.b16 %v842, %v841
  %v852 = vsel %vm594, %v816, 0
  %v855 = vsel %vm594, %v817, 0
  %857 = vmatprep.subr.bf16.mxu0 0
  %858 = vmatpush1.bf16.msra.mxu0 %v843
  %859 = vmatprep.subr.bf16.mxu0 0
  %860 = vmatpush1.bf16.msra.mxu0 %v844
  %861 = vmatprep.subr.bf16.mxu0 0
  %862 = vmatpush1.bf16.msra.mxu0 %v845
  %863 = vmatprep.subr.bf16.mxu0 0
  %864 = vmatpush1.bf16.msra.mxu0 %v846
  %865 = vmatprep.subr.bf16.mxu0 0
  %866 = vmatpush1.bf16.msra.mxu0 0
  %867 = vmatprep.subr.bf16.mxu0 0
  %868 = vmatpush1.bf16.msra.mxu0 0
  %869 = vmatprep.subr.bf16.mxu0 0
  %870 = vmatpush1.bf16.msra.mxu0 0
  %871 = vmatprep.subr.bf16.mxu0 0
  %872 = vmatpush1.bf16.msra.mxu0 0
  %873 = vmatprep.subr.bf16.mxu0 0
  %874 = vmatpush1.bf16.msra.mxu0 0
  %875 = vmatprep.subr.bf16.mxu0 0
  %876 = vmatpush1.bf16.msra.mxu0 0
  %877 = vmatprep.subr.bf16.mxu0 0
  %878 = vmatpush1.bf16.msra.mxu0 0
  %879 = vmatprep.subr.bf16.mxu0 0
  %880 = vmatpush1.bf16.msra.mxu0 0
  %881 = vmatprep.subr.bf16.mxu0 0
  %882 = vmatpush1.bf16.msra.mxu0 0
  %883 = vmatprep.subr.bf16.mxu0 0
  %884 = vmatpush1.bf16.msra.mxu0 0
  %885 = vmatprep.subr.bf16.mxu0 0
  %886 = vmatpush1.bf16.msra.mxu0 0
  %887 = vmatprep.subr.bf16.mxu0 0
  %888 = vmatpush1.bf16.msra.mxu0 0
  %889 = vmatprep.mubr.bf16.mxu0 0
  %890 = vmatmul.mubr.bf16.gmra.mrb[0].mxu0 %v852
  %v891 = vpop.f32.mrb[0].mxu0
  %v892 = vadd.f32 0.0, %v891
  %v893 = vpop.f32.mrb[0].mxu0
  %v894 = vpop.f32.mrb[0].mxu0
  %v895 = vadd.f32 0.0, %v894
  %v896 = vpop.f32.mrb[0].mxu0
  %897 = vmatprep.mubr.bf16.mxu0 0
  %898 = vmatmul.mubr.bf16.gmra.mrb[0].mxu0 %v855
  %v899 = vpop.f32.mrb[0].mxu0
  %v900 = vadd.f32 0.0, %v899
  %v901 = vpop.f32.mrb[0].mxu0
  %v902 = vpop.f32.mrb[0].mxu0
  %v903 = vadd.f32 0.0, %v902
  %v904 = vpop.f32.mrb[0].mxu0
  %905 = vdwg.mxu0
  %v906 = vadd.f32 %v742, %v892
  %v907 = vadd.f32 %v743, %v895
  %v908 = vadd.f32 %v744, %v900
  %v909 = vadd.f32 %v745, %v903
  %v910 = vlaneseq
  %v911 = vshrl.u32 %v910, 7
  %v912 = vsub.s32 0, %v911
  %v913 = vrot.slane %v36, %v912
  %v914 = vmul.f32 %v906, %v913
  %v915 = vmul.f32 %v907, %v913
  %v916 = vmul.f32 %v908, %v913
  %v917 = vmul.f32 %v909, %v913
  %v918 = vlaneseq
  %v919 = vshrl.u32 %v918, 7
  %v920 = vsub.s32 1, %v919
  %v921 = vrot.slane %v36, %v920
  %v922 = vadd.f32 %v914, %v921
  %v923 = vadd.f32 %v915, %v921
  %v924 = vadd.f32 %v916, %v921
  %v925 = vadd.f32 %v917, %v921
  %v926 = vmax.f32 %v922, 0.0
  %v927 = vmax.f32 %v923, 0.0
  %v928 = vmax.f32 %v924, 0.0
  %v929 = vmax.f32 %v925, 0.0
  %v930 = vpack.c.bf16 %v927, %v926
  %v931 = vpack.c.bf16 %v929, %v928
  %932 = vmatprep.subr.bf16.mxu0 0
  %933 = vmatpush1.bf16.msra.mxu0 %v930
  %934 = vmatprep.subr.bf16.mxu0 0
  %935 = vmatpush1.bf16.msra.mxu0 %v931
  %936 = vmatprep.subr.bf16.mxu0 0
  %937 = vmatpush1.bf16.msra.mxu0 0
  %938 = vmatprep.subr.bf16.mxu0 0
  %939 = vmatpush1.bf16.msra.mxu0 0
  %940 = vmatprep.subr.bf16.mxu0 0
  %941 = vmatpush1.bf16.msra.mxu0 0
  %942 = vmatprep.subr.bf16.mxu0 0
  %943 = vmatpush1.bf16.msra.mxu0 0
  %944 = vmatprep.subr.bf16.mxu0 0
  %945 = vmatpush1.bf16.msra.mxu0 0
  %946 = vmatprep.subr.bf16.mxu0 0
  %947 = vmatpush1.bf16.msra.mxu0 0
  %948 = vmatprep.subr.bf16.mxu0 0
  %949 = vmatpush1.bf16.msra.mxu0 0
  %950 = vmatprep.subr.bf16.mxu0 0
  %951 = vmatpush1.bf16.msra.mxu0 0
  %952 = vmatprep.subr.bf16.mxu0 0
  %953 = vmatpush1.bf16.msra.mxu0 0
  %954 = vmatprep.subr.bf16.mxu0 0
  %955 = vmatpush1.bf16.msra.mxu0 0
  %956 = vmatprep.subr.bf16.mxu0 0
  %957 = vmatpush1.bf16.msra.mxu0 0
  %958 = vmatprep.subr.bf16.mxu0 0
  %959 = vmatpush1.bf16.msra.mxu0 0
  %960 = vmatprep.subr.bf16.mxu0 0
  %961 = vmatpush1.bf16.msra.mxu0 0
  %962 = vmatprep.subr.bf16.mxu0 0
  %963 = vmatpush1.bf16.msra.mxu0 0
  %964 = vmatprep.mubr.bf16.mxu0 0
  %965 = vmatmul.mubr.bf16.gmra.mrb[0].mxu0 %v506
  %v966 = vpop.f32.mrb[0].mxu0
  %v967 = vadd.f32 0.0, %v966
  %v968 = vpop.f32.mrb[0].mxu0
  %v969 = vpop.f32.mrb[0].mxu0
  %v970 = vadd.f32 0.0, %v969
  %v971 = vpop.f32.mrb[0].mxu0
  %972 = vmatprep.mubr.bf16.mxu0 0
  %973 = vmatmul.mubr.bf16.gmra.mrb[0].mxu0 %v509
  %v974 = vpop.f32.mrb[0].mxu0
  %v975 = vadd.f32 0.0, %v974
  %v976 = vpop.f32.mrb[0].mxu0
  %v977 = vpop.f32.mrb[0].mxu0
  %v978 = vadd.f32 0.0, %v977
  %v979 = vpop.f32.mrb[0].mxu0
  %980 = vdwg.mxu0
  %v981 = vpack.c.bf16 %v970, %v967
  %v982 = vpack.c.bf16 %v978, %v975
  %v983 = vld [vmem:[%s6] sm:$0xf]
  %v984 = vld [vmem:[%s6 + $0x4] sm:$0xf]
  %v985 = vld [vmem:[%s6 + $0x8] sm:$0xf]
  %v986 = vld [vmem:[%s6 + $0xc] sm:$0xf]
  %v987 = vld [vmem:[%s6 + $0x10] sm:$0xf]
  %v988 = vld [vmem:[%s6 + $0x14] sm:$0xf]
  %v989 = vld [vmem:[%s6 + $0x18] sm:$0xf]
  %v990 = vld [vmem:[%s6 + $0x1c] sm:$0xf]
  %v991 = vld [vmem:[%s6 + $0x20] sm:$0xf]
  %v992 = vld [vmem:[%s6 + $0x24] sm:$0xf]
  %v993 = vld [vmem:[%s6 + $0x28] sm:$0xf]
  %v994 = vld [vmem:[%s6 + $0x2c] sm:$0xf]
  %v995 = vld [vmem:[%s6 + $0x30] sm:$0xf]
  %v996 = vld [vmem:[%s6 + $0x34] sm:$0xf]
  %v997 = vld [vmem:[%s6 + $0x38] sm:$0xf]
  %v998 = vld [vmem:[%s6 + $0x3c] sm:$0xf]
  %s999 = scalar_lea.vmem %s6, 64
  %v1000 = vld [vmem:[%s999] sm:$0xf]
  %v1001 = vld [vmem:[%s999 + $0x4] sm:$0xf]
  %v1002 = vld [vmem:[%s999 + $0x8] sm:$0xf]
  %v1003 = vld [vmem:[%s999 + $0xc] sm:$0xf]
  %v1004 = vld [vmem:[%s999 + $0x10] sm:$0xf]
  %v1005 = vld [vmem:[%s999 + $0x14] sm:$0xf]
  %v1006 = vld [vmem:[%s999 + $0x18] sm:$0xf]
  %v1007 = vld [vmem:[%s999 + $0x1c] sm:$0xf]
  %v1008 = vld [vmem:[%s999 + $0x20] sm:$0xf]
  %v1009 = vld [vmem:[%s999 + $0x24] sm:$0xf]
  %v1010 = vld [vmem:[%s999 + $0x28] sm:$0xf]
  %v1011 = vld [vmem:[%s999 + $0x2c] sm:$0xf]
  %v1012 = vld [vmem:[%s999 + $0x30] sm:$0xf]
  %v1013 = vld [vmem:[%s999 + $0x34] sm:$0xf]
  %v1014 = vld [vmem:[%s999 + $0x38] sm:$0xf]
  %v1015 = vld [vmem:[%s999 + $0x3c] sm:$0xf]
  %v1032 = vunpack.c.l.b16 %v1000
  %v1033 = vunpack.c.l.b16 %v1001
  %v1034 = vunpack.c.l.b16 %v1002
  %v1035 = vunpack.c.l.b16 %v1003
  %v1036 = vunpack.c.l.b16 %v1004
  %v1037 = vunpack.c.l.b16 %v1005
  %v1038 = vunpack.c.l.b16 %v1006
  %v1039 = vunpack.c.l.b16 %v1007
  %v1040 = vunpack.c.l.b16 %v1008
  %v1041 = vunpack.c.l.b16 %v1009
  %v1042 = vunpack.c.l.b16 %v1010
  %v1043 = vunpack.c.l.b16 %v1011
  %v1044 = vunpack.c.l.b16 %v1012
  %v1045 = vunpack.c.l.b16 %v1013
  %v1046 = vunpack.c.l.b16 %v1014
  %v1047 = vunpack.c.l.b16 %v1015
  %v1048 = vpack.c.b16 %v1033, %v1032
  %v1049 = vpack.c.b16 %v1035, %v1034
  %v1050 = vpack.c.b16 %v1037, %v1036
  %v1051 = vpack.c.b16 %v1039, %v1038
  %v1052 = vpack.c.b16 %v1041, %v1040
  %v1053 = vpack.c.b16 %v1043, %v1042
  %v1054 = vpack.c.b16 %v1045, %v1044
  %v1055 = vpack.c.b16 %v1047, %v1046
  %1064 = vmatprep.subr.bf16.mxu0 0
  %1065 = vmatpush1.bf16.msra.mxu0 %v1048
  %1066 = vmatprep.subr.bf16.mxu0 0
  %1067 = vmatpush1.bf16.msra.mxu0 %v1049
  %1068 = vmatprep.subr.bf16.mxu0 0
  %1069 = vmatpush1.bf16.msra.mxu0 %v1050
  %1070 = vmatprep.subr.bf16.mxu0 0
  %1071 = vmatpush1.bf16.msra.mxu0 %v1051
  %1072 = vmatprep.subr.bf16.mxu0 0
  %1073 = vmatpush1.bf16.msra.mxu0 %v1052
  %1074 = vmatprep.subr.bf16.mxu0 0
  %1075 = vmatpush1.bf16.msra.mxu0 %v1053
  %1076 = vmatprep.subr.bf16.mxu0 0
  %1077 = vmatpush1.bf16.msra.mxu0 %v1054
  %1078 = vmatprep.subr.bf16.mxu0 0
  %1079 = vmatpush1.bf16.msra.mxu0 %v1055
  %1080 = vmatprep.subr.bf16.mxu0 0
  %1081 = vmatpush1.bf16.msra.mxu0 0
  %1082 = vmatprep.subr.bf16.mxu0 0
  %1083 = vmatpush1.bf16.msra.mxu0 0
  %1084 = vmatprep.subr.bf16.mxu0 0
  %1085 = vmatpush1.bf16.msra.mxu0 0
  %1086 = vmatprep.subr.bf16.mxu0 0
  %1087 = vmatpush1.bf16.msra.mxu0 0
  %1088 = vmatprep.subr.bf16.mxu0 0
  %1089 = vmatpush1.bf16.msra.mxu0 0
  %1090 = vmatprep.subr.bf16.mxu0 0
  %1091 = vmatpush1.bf16.msra.mxu0 0
  %1092 = vmatprep.subr.bf16.mxu0 0
  %1093 = vmatpush1.bf16.msra.mxu0 0
  %1094 = vmatprep.subr.bf16.mxu0 0
  %1095 = vmatpush1.bf16.msra.mxu0 0
  %1096 = vmatprep.mubr.bf16.mxu0 0
  %1097 = vmatmul.mubr.bf16.gmra.mrb[0].mxu0 %v930
  %v1098 = vpop.f32.mrb[0].mxu0
  %v1099 = vadd.f32 0.0, %v1098
  %v1100 = vpop.f32.mrb[0].mxu0
  %v1101 = vpop.f32.mrb[0].mxu0
  %v1102 = vadd.f32 0.0, %v1101
  %v1103 = vpop.f32.mrb[0].mxu0
  %1104 = vmatprep.mubr.bf16.mxu0 0
  %1105 = vmatmul.mubr.bf16.gmra.mrb[0].mxu0 %v931
  %v1106 = vpop.f32.mrb[0].mxu0
  %v1107 = vadd.f32 0.0, %v1106
  %v1108 = vpop.f32.mrb[0].mxu0
  %v1109 = vpop.f32.mrb[0].mxu0
  %v1110 = vadd.f32 0.0, %v1109
  %v1111 = vpop.f32.mrb[0].mxu0
  %1112 = vdwg.mxu0
  %v1129 = vunpack.c.l.b16 %v983
  %v1130 = vunpack.c.l.b16 %v984
  %v1131 = vunpack.c.l.b16 %v985
  %v1132 = vunpack.c.l.b16 %v986
  %v1133 = vunpack.c.l.b16 %v987
  %v1134 = vunpack.c.l.b16 %v988
  %v1135 = vunpack.c.l.b16 %v989
  %v1136 = vunpack.c.l.b16 %v990
  %v1137 = vunpack.c.l.b16 %v991
  %v1138 = vunpack.c.l.b16 %v992
  %v1139 = vunpack.c.l.b16 %v993
  %v1140 = vunpack.c.l.b16 %v994
  %v1141 = vunpack.c.l.b16 %v995
  %v1142 = vunpack.c.l.b16 %v996
  %v1143 = vunpack.c.l.b16 %v997
  %v1144 = vunpack.c.l.b16 %v998
  %v1145 = vpack.c.b16 %v1130, %v1129
  %v1146 = vpack.c.b16 %v1132, %v1131
  %v1147 = vpack.c.b16 %v1134, %v1133
  %v1148 = vpack.c.b16 %v1136, %v1135
  %v1149 = vpack.c.b16 %v1138, %v1137
  %v1150 = vpack.c.b16 %v1140, %v1139
  %v1151 = vpack.c.b16 %v1142, %v1141
  %v1152 = vpack.c.b16 %v1144, %v1143
  %1161 = vmatprep.subr.bf16.mxu0 0
  %1162 = vmatpush1.bf16.msra.mxu0 %v1145
  %1163 = vmatprep.subr.bf16.mxu0 0
  %1164 = vmatpush1.bf16.msra.mxu0 %v1146
  %1165 = vmatprep.subr.bf16.mxu0 0
  %1166 = vmatpush1.bf16.msra.mxu0 %v1147
  %1167 = vmatprep.subr.bf16.mxu0 0
  %1168 = vmatpush1.bf16.msra.mxu0 %v1148
  %1169 = vmatprep.subr.bf16.mxu0 0
  %1170 = vmatpush1.bf16.msra.mxu0 %v1149
  %1171 = vmatprep.subr.bf16.mxu0 0
  %1172 = vmatpush1.bf16.msra.mxu0 %v1150
  %1173 = vmatprep.subr.bf16.mxu0 0
  %1174 = vmatpush1.bf16.msra.mxu0 %v1151
  %1175 = vmatprep.subr.bf16.mxu0 0
  %1176 = vmatpush1.bf16.msra.mxu0 %v1152
  %1177 = vmatprep.subr.bf16.mxu0 0
  %1178 = vmatpush1.bf16.msra.mxu0 0
  %1179 = vmatprep.subr.bf16.mxu0 0
  %1180 = vmatpush1.bf16.msra.mxu0 0
  %1181 = vmatprep.subr.bf16.mxu0 0
  %1182 = vmatpush1.bf16.msra.mxu0 0
  %1183 = vmatprep.subr.bf16.mxu0 0
  %1184 = vmatpush1.bf16.msra.mxu0 0
  %1185 = vmatprep.subr.bf16.mxu0 0
  %1186 = vmatpush1.bf16.msra.mxu0 0
  %1187 = vmatprep.subr.bf16.mxu0 0
  %1188 = vmatpush1.bf16.msra.mxu0 0
  %1189 = vmatprep.subr.bf16.mxu0 0
  %1190 = vmatpush1.bf16.msra.mxu0 0
  %1191 = vmatprep.subr.bf16.mxu0 0
  %1192 = vmatpush1.bf16.msra.mxu0 0
  %1193 = vmatprep.mubr.bf16.mxu0 0
  %1194 = vmatmul.mubr.bf16.gmra.mrb[0].mxu0 %v981
  %v1195 = vpop.f32.mrb[0].mxu0
  %v1196 = vadd.f32 %v1099, %v1195
  %v1197 = vpop.f32.mrb[0].mxu0
  %v1198 = vpop.f32.mrb[0].mxu0
  %v1199 = vadd.f32 %v1102, %v1198
  %v1200 = vpop.f32.mrb[0].mxu0
  %1201 = vmatprep.mubr.bf16.mxu0 0
  %1202 = vmatmul.mubr.bf16.gmra.mrb[0].mxu0 %v982
  %v1203 = vpop.f32.mrb[0].mxu0
  %v1204 = vadd.f32 %v1107, %v1203
  %v1205 = vpop.f32.mrb[0].mxu0
  %v1206 = vpop.f32.mrb[0].mxu0
  %v1207 = vadd.f32 %v1110, %v1206
  %v1208 = vpop.f32.mrb[0].mxu0
  %1209 = vdwg.mxu0
  %1210 = vmatprep.subr.bf16.mxu0 0
  %1211 = vmatpush1.bf16.msra.mxu0 %v930
  %1212 = vmatprep.subr.bf16.mxu0 0
  %1213 = vmatpush1.bf16.msra.mxu0 %v931
  %1214 = vmatprep.subr.bf16.mxu0 0
  %1215 = vmatpush1.bf16.msra.mxu0 0
  %1216 = vmatprep.subr.bf16.mxu0 0
  %1217 = vmatpush1.bf16.msra.mxu0 0
  %1218 = vmatprep.subr.bf16.mxu0 0
  %1219 = vmatpush1.bf16.msra.mxu0 0
  %1220 = vmatprep.subr.bf16.mxu0 0
  %1221 = vmatpush1.bf16.msra.mxu0 0
  %1222 = vmatprep.subr.bf16.mxu0 0
  %1223 = vmatpush1.bf16.msra.mxu0 0
  %1224 = vmatprep.subr.bf16.mxu0 0
  %1225 = vmatpush1.bf16.msra.mxu0 0
  %1226 = vmatprep.subr.bf16.mxu0 0
  %1227 = vmatpush1.bf16.msra.mxu0 0
  %1228 = vmatprep.subr.bf16.mxu0 0
  %1229 = vmatpush1.bf16.msra.mxu0 0
  %1230 = vmatprep.subr.bf16.mxu0 0
  %1231 = vmatpush1.bf16.msra.mxu0 0
  %1232 = vmatprep.subr.bf16.mxu0 0
  %1233 = vmatpush1.bf16.msra.mxu0 0
  %1234 = vmatprep.subr.bf16.mxu0 0
  %1235 = vmatpush1.bf16.msra.mxu0 0
  %1236 = vmatprep.subr.bf16.mxu0 0
  %1237 = vmatpush1.bf16.msra.mxu0 0
  %1238 = vmatprep.subr.bf16.mxu0 0
  %1239 = vmatpush1.bf16.msra.mxu0 0
  %1240 = vmatprep.subr.bf16.mxu0 0
  %1241 = vmatpush1.bf16.msra.mxu0 0
  %1242 = vmatprep.mubr.bf16.mxu0 0
  %1243 = vmatmul.mubr.bf16.gmra.mrb[0].mxu0 %v762
  %v1244 = vpop.f32.mrb[0].mxu0
  %v1245 = vadd.f32 0.0, %v1244
  %v1246 = vpop.f32.mrb[0].mxu0
  %v1247 = vpop.f32.mrb[0].mxu0
  %v1248 = vadd.f32 0.0, %v1247
  %v1249 = vpop.f32.mrb[0].mxu0
  %1250 = vmatprep.mubr.bf16.mxu0 0
  %1251 = vmatmul.mubr.bf16.gmra.mrb[0].mxu0 %v765
  %v1252 = vpop.f32.mrb[0].mxu0
  %v1253 = vadd.f32 0.0, %v1252
  %v1254 = vpop.f32.mrb[0].mxu0
  %v1255 = vpop.f32.mrb[0].mxu0
  %v1256 = vadd.f32 0.0, %v1255
  %v1257 = vpop.f32.mrb[0].mxu0
  %1258 = vdwg.mxu0
  %v1259 = vpack.c.bf16 %v1248, %v1245
  %v1260 = vpack.c.bf16 %v1256, %v1253
  %s1261 = scalar_lea.vmem %s6, 128
  %v1262 = vld [vmem:[%s1261] sm:$0xf]
  %v1263 = vld [vmem:[%s1261 + $0x4] sm:$0xf]
  %v1264 = vld [vmem:[%s1261 + $0x8] sm:$0xf]
  %v1265 = vld [vmem:[%s1261 + $0xc] sm:$0xf]
  %v1266 = vld [vmem:[%s1261 + $0x10] sm:$0xf]
  %v1267 = vld [vmem:[%s1261 + $0x14] sm:$0xf]
  %v1268 = vld [vmem:[%s1261 + $0x18] sm:$0xf]
  %v1269 = vld [vmem:[%s1261 + $0x1c] sm:$0xf]
  %v1270 = vld [vmem:[%s1261 + $0x20] sm:$0xf]
  %v1271 = vld [vmem:[%s1261 + $0x24] sm:$0xf]
  %v1272 = vld [vmem:[%s1261 + $0x28] sm:$0xf]
  %v1273 = vld [vmem:[%s1261 + $0x2c] sm:$0xf]
  %v1274 = vld [vmem:[%s1261 + $0x30] sm:$0xf]
  %v1275 = vld [vmem:[%s1261 + $0x34] sm:$0xf]
  %v1276 = vld [vmem:[%s1261 + $0x38] sm:$0xf]
  %v1277 = vld [vmem:[%s1261 + $0x3c] sm:$0xf]
  %v1294 = vunpack.c.l.b16 %v1262
  %v1295 = vunpack.c.l.b16 %v1263
  %v1296 = vunpack.c.l.b16 %v1264
  %v1297 = vunpack.c.l.b16 %v1265
  %v1298 = vunpack.c.l.b16 %v1266
  %v1299 = vunpack.c.l.b16 %v1267
  %v1300 = vunpack.c.l.b16 %v1268
  %v1301 = vunpack.c.l.b16 %v1269
  %v1302 = vunpack.c.l.b16 %v1270
  %v1303 = vunpack.c.l.b16 %v1271
  %v1304 = vunpack.c.l.b16 %v1272
  %v1305 = vunpack.c.l.b16 %v1273
  %v1306 = vunpack.c.l.b16 %v1274
  %v1307 = vunpack.c.l.b16 %v1275
  %v1308 = vunpack.c.l.b16 %v1276
  %v1309 = vunpack.c.l.b16 %v1277
  %v1310 = vpack.c.b16 %v1295, %v1294
  %v1311 = vpack.c.b16 %v1297, %v1296
  %v1312 = vpack.c.b16 %v1299, %v1298
  %v1313 = vpack.c.b16 %v1301, %v1300
  %v1314 = vpack.c.b16 %v1303, %v1302
  %v1315 = vpack.c.b16 %v1305, %v1304
  %v1316 = vpack.c.b16 %v1307, %v1306
  %v1317 = vpack.c.b16 %v1309, %v1308
  %1326 = vmatprep.subr.bf16.mxu0 0
  %1327 = vmatpush1.bf16.msra.mxu0 %v1310
  %1328 = vmatprep.subr.bf16.mxu0 0
  %1329 = vmatpush1.bf16.msra.mxu0 %v1311
  %1330 = vmatprep.subr.bf16.mxu0 0
  %1331 = vmatpush1.bf16.msra.mxu0 %v1312
  %1332 = vmatprep.subr.bf16.mxu0 0
  %1333 = vmatpush1.bf16.msra.mxu0 %v1313
  %1334 = vmatprep.subr.bf16.mxu0 0
  %1335 = vmatpush1.bf16.msra.mxu0 %v1314
  %1336 = vmatprep.subr.bf16.mxu0 0
  %1337 = vmatpush1.bf16.msra.mxu0 %v1315
  %1338 = vmatprep.subr.bf16.mxu0 0
  %1339 = vmatpush1.bf16.msra.mxu0 %v1316
  %1340 = vmatprep.subr.bf16.mxu0 0
  %1341 = vmatpush1.bf16.msra.mxu0 %v1317
  %1342 = vmatprep.subr.bf16.mxu0 0
  %1343 = vmatpush1.bf16.msra.mxu0 0
  %1344 = vmatprep.subr.bf16.mxu0 0
  %1345 = vmatpush1.bf16.msra.mxu0 0
  %1346 = vmatprep.subr.bf16.mxu0 0
  %1347 = vmatpush1.bf16.msra.mxu0 0
  %1348 = vmatprep.subr.bf16.mxu0 0
  %1349 = vmatpush1.bf16.msra.mxu0 0
  %1350 = vmatprep.subr.bf16.mxu0 0
  %1351 = vmatpush1.bf16.msra.mxu0 0
  %1352 = vmatprep.subr.bf16.mxu0 0
  %1353 = vmatpush1.bf16.msra.mxu0 0
  %1354 = vmatprep.subr.bf16.mxu0 0
  %1355 = vmatpush1.bf16.msra.mxu0 0
  %1356 = vmatprep.subr.bf16.mxu0 0
  %1357 = vmatpush1.bf16.msra.mxu0 0
  %1358 = vmatprep.mubr.bf16.mxu0 0
  %1359 = vmatmul.mubr.bf16.gmra.mrb[0].mxu0 %v1259
  %v1360 = vpop.f32.mrb[0].mxu0
  %v1361 = vadd.f32 0.0, %v1360
  %v1362 = vpop.f32.mrb[0].mxu0
  %v1363 = vpop.f32.mrb[0].mxu0
  %v1364 = vadd.f32 0.0, %v1363
  %v1365 = vpop.f32.mrb[0].mxu0
  %1366 = vmatprep.mubr.bf16.mxu0 0
  %1367 = vmatmul.mubr.bf16.gmra.mrb[0].mxu0 %v1260
  %v1368 = vpop.f32.mrb[0].mxu0
  %v1369 = vadd.f32 0.0, %v1368
  %v1370 = vpop.f32.mrb[0].mxu0
  %v1371 = vpop.f32.mrb[0].mxu0
  %v1372 = vadd.f32 0.0, %v1371
  %v1373 = vpop.f32.mrb[0].mxu0
  %1374 = vdwg.mxu0
  %v1375 = vadd.f32 %v1196, %v1361
  %v1376 = vadd.f32 %v1199, %v1364
  %v1377 = vadd.f32 %v1204, %v1369
  %v1378 = vadd.f32 %v1207, %v1372
  %v1379 = vlaneseq
  %v1380 = vshrl.u32 %v1379, 7
  %v1381 = vsub.s32 2, %v1380
  %v1382 = vrot.slane %v36, %v1381
  %v1383 = vmul.f32 %v1375, %v1382
  %v1384 = vmul.f32 %v1376, %v1382
  %v1385 = vmul.f32 %v1377, %v1382
  %v1386 = vmul.f32 %v1378, %v1382
  %v1387 = vlaneseq
  %v1388 = vshrl.u32 %v1387, 7
  %v1389 = vsub.s32 3, %v1388
  %v1390 = vrot.slane %v36, %v1389
  %v1391 = vadd.f32 %v1383, %v1390
  %v1392 = vadd.f32 %v1384, %v1390
  %v1393 = vadd.f32 %v1385, %v1390
  %v1394 = vadd.f32 %v1386, %v1390
  %v1395 = vmax.f32 %v1391, 0.0
  %v1396 = vmax.f32 %v1392, 0.0
  %v1397 = vmax.f32 %v1393, 0.0
  %v1398 = vmax.f32 %v1394, 0.0
  %1399 = vst [vmem:[%s8] sm:$0xff] %v1395
  %1400 = vst [vmem:[%s8 + $0x8] sm:$0xff] %v1396
  %1401 = vst [vmem:[%s8 + $0x10] sm:$0xff] %v1397
  %1402 = vst [vmem:[%s8 + $0x18] sm:$0xff] %v1398
  // Predicated region
  $region34: #{decoder_block_forward.1} parent=0 // pred_check
    _
  $region35: #{decoder_block_forward.1} parent=0 // pred_check_branch
    %1404 = sbr.rel (0) target = $region37
  $region36: #{decoder_block_forward.1} parent=0 // pred_region
    _
  $region37: #{decoder_block_forward.1} parent=0 // pred_fallthru
    _
  // Predicated region
  $region38: #{decoder_block_forward.1} parent=0 // pred_check
    _
  $region39: #{decoder_block_forward.1} parent=0 // pred_check_branch
    %1406 = sbr.rel (0) target = $region41
  $region40: #{decoder_block_forward.1} parent=0 // pred_region
    _
  $region41: #{decoder_block_forward.1} parent=0 // pred_fallthru
    _

</llo_original>
